<compile_context>
chip_gen: v5e
topology: v5e:2x2
jax: 0.10.0
libtpu: 0.0.40
codegen_flags: <defaults>
</compile_context>

<pallas_src>
import functools
import math

import jax
import jax.numpy as jnp
from jax import lax
from jax.experimental import pallas as pl
from jax.experimental.pallas import tpu as pltpu


def _self_attn_word_kernel(v_ref, q_ref, out_ref, *opt_attn_ref, scale,
                           block_batch):
    """Processes `block_batch` independent attention problems per grid step.

    v_ref:    (Bt, da, dim)   inputs for this block
    q_ref:    (dim, da)       shared query parameter
    out_ref:  (Bt, da, dim)   attention^T @ v
    attn_ref: (Bt, dim, da)   softmax(v^T @ query / sqrt(dim))  [optional]
    """
    attn_ref = opt_attn_ref[0] if opt_attn_ref else None
    q = q_ref[...]  # (dim, da), resident for the whole block

    # Small static unroll over the problems in this block; each problem is a
    # pair of tiny MXU matmuls plus a row softmax (live ranges are tiny).
    for i in range(block_batch):
        v = v_ref[i]                                   # (da, dim)

        # s = v^T @ query : contract axis 0 of both operands; the MXU consumes
        # the transposed contraction directly (no explicit transpose).
        s = lax.dot_general(
            v, q,
            dimension_numbers=(((0,), (0,)), ((), ())),
            preferred_element_type=jnp.float32,
        ) * scale                                       # (dim, da)

        # Row-wise softmax (PyTorch F.softmax default dim=1 on a 2-D tensor).
        s_max = jnp.max(s, axis=-1, keepdims=True)
        e = jnp.exp(s - s_max)
        denom = jnp.sum(e, axis=-1, keepdims=True)
        attn = e * pl.reciprocal(denom, approx=False)   # exact: 1e-5 tolerance

        # out = attention^T @ v : again contract axis 0 of both operands.
        out = lax.dot_general(
            attn, v,
            dimension_numbers=(((0,), (0,)), ((), ())),
            preferred_element_type=jnp.float32,
        )                                               # (da, dim)

        out_ref[i] = out.astype(out_ref.dtype)
        if attn_ref is not None:
            attn_ref[i] = attn.astype(attn_ref.dtype)


def _pick_block_batch(B, max_bt=8):
    """Largest divisor of B that is <= max_bt, preferring >= 2 grid steps so
    the ("parallel",) batch axis can shard across v7x's two TensorCores."""
    divisors = [d for d in range(1, min(B, max_bt) + 1) if B % d == 0]
    bt = divisors[-1]
    while bt > 1 and B // bt < 2:
        divisors.pop()
        bt = divisors[-1]
    return bt


def self_attn_word_batched(v, query, *, return_attention=True,
                           block_batch=None):
    """Batched forward: v (B, da, dim), query (dim, da).

    Returns out (B, da, dim) and, if return_attention, attention (B, dim, da)
    -- one independent selfAttn_word forward per batch element, computed in a
    single pallas_call.
    """
    B, da, dim = v.shape
    assert query.shape == (dim, da)
    assert dim == da, "original PyTorch forward only type-checks when dim == da"

    bt = block_batch if block_batch is not None else _pick_block_batch(B)
    assert B % bt == 0, "block_batch must divide the batch size"
    grid = (B // bt,)

    n_out = 2 if return_attention else 1
    out_shape = [jax.ShapeDtypeStruct((B, da, dim), jnp.float32)]      # out
    out_specs = [pl.BlockSpec((bt, da, dim), lambda b: (b, 0, 0))]
    if return_attention:
        out_shape.append(jax.ShapeDtypeStruct((B, dim, da), jnp.float32))
        out_specs.append(pl.BlockSpec((bt, dim, da), lambda b: (b, 0, 0)))

    # Per-step VMEM working set: double-buffered v block + output block(s) +
    # the resident query. Set the scoped VMEM limit explicitly (reproducible
    # Bt sweeps; stays well under v7x's 64 MiB-per-TC physical VMEM).
    step_bytes = 4 * (2 * bt * da * dim * (1 + n_out) + 2 * dim * da)
    vmem_limit = int(min(max(2 * step_bytes, 32 * 1024 * 1024),
                         48 * 1024 * 1024))

    # TODO(synk): if dim/da grow past ~1280-1536 (v7x: 64 MiB VMEM/TC) or
    # ~2048 (v5e/v6e: 128 MiB), add row-tiling over the M axis (reduction axis
    # last in the grid) instead of full-extent blocks.
    kernel = functools.partial(
        _self_attn_word_kernel,
        scale=1.0 / math.sqrt(float(dim)),
        block_batch=bt,
    )

    results = pl.pallas_call(
        kernel,
        out_shape=tuple(out_shape),
        grid=grid,
        in_specs=[
            pl.BlockSpec((bt, da, dim), lambda b: (b, 0, 0)),    # v
            pl.BlockSpec((dim, da), lambda b: (0, 0)),           # query (shared)
        ],
        out_specs=tuple(out_specs),
        compiler_params=pltpu.CompilerParams(
            dimension_semantics=("parallel",),
            vmem_limit_bytes=vmem_limit,
        ),
    )(v, query)

    if return_attention:
        out, attn = results
        return out, attn
    (out,) = results
    return out


def self_attn_word(v, query):
    """Single-problem forward matching the PyTorch module. v: (da, dim)."""
    out, attn = self_attn_word_batched(v[None], query, return_attention=True)
    return out[0], attn[0]


def init_query_xavier_uniform(key, dim, da, gain=1.414):
    # PyTorch xavier_uniform_ on a (dim, da) tensor: fan_out=dim, fan_in=da.
    fan_in, fan_out = da, dim
    bound = gain * math.sqrt(6.0 / (fan_in + fan_out))
    return jax.random.uniform(
        key, (dim, da), dtype=jnp.float32, minval=-bound, maxval=bound
    )


def _reference(v, query, dim):
    s = (v.T @ query) / math.sqrt(float(dim))
    attn = jax.nn.softmax(s, axis=-1)
    return attn.T @ v, attn


if __name__ == "__main__":
    # Small shapes; forward requires dim == da.
    dim = 32
    da = 32
    B = 8

    key = jax.random.PRNGKey(0)
    k_q, k_v = jax.random.split(key)

    query = init_query_xavier_uniform(k_q, dim, da)
    v_batch = jax.random.normal(k_v, (B, da, dim), dtype=jnp.float32)

    # Batched call: B independent problems, Bt per grid step, both outputs.
    out_b, attn_b = self_attn_word_batched(v_batch, query)
    jax.block_until_ready((out_b, attn_b))

    for b in range(B):
        out_ref, attn_ref = _reference(v_batch[b], query, dim)
        assert jnp.allclose(out_b[b], out_ref, atol=1e-4, rtol=1e-4)
        assert jnp.allclose(attn_b[b], attn_ref, atol=1e-5, rtol=1e-5)

    # Out-only path (halves output writeback when attention isn't needed).
    out_only = self_attn_word_batched(v_batch, query, return_attention=False)
    jax.block_until_ready(out_only)
    assert jnp.allclose(out_only, out_b, atol=1e-6, rtol=1e-6)

    # Single-problem forward (exact PyTorch module semantics).
    out1, attn1 = self_attn_word(v_batch[0], query)
    jax.block_until_ready((out1, attn1))
    out_ref, attn_ref = _reference(v_batch[0], query, dim)
    assert jnp.allclose(out1, out_ref, atol=1e-4, rtol=1e-4)
    assert jnp.allclose(attn1, attn_ref, atol=1e-5, rtol=1e-5)

    print("KERNEL_OK")
</pallas_src>

<mosaic_0001>
module attributes {stable_mosaic.version = 11 : i64} {
  func.func @_self_attn_word_kernel(%arg0: i32, %arg1: memref<4x32x32xf32, #tpu.memory_space<vmem>>, %arg2: memref<32x32xf32, #tpu.memory_space<vmem>>, %arg3: memref<4x32x32xf32, #tpu.memory_space<vmem>>, %arg4: memref<4x32x32xf32, #tpu.memory_space<vmem>>) attributes {dimension_semantics = [#tpu.dimension_semantics<parallel>], iteration_bounds = array<i64: 2>, scalar_prefetch = 0 : i64, scratch_operands = 0 : i64, tpu.core_type = #tpu.core_type<tc>, window_params = [{transform_indices = @transform_0, window_bounds = array<i64: 4, 32, 32>}, {pipeline_mode = #tpu.pipeline_mode<synchronous>, transform_indices = @transform_1, window_bounds = array<i64: 32, 32>}, {transform_indices = @transform_2, window_bounds = array<i64: 4, 32, 32>}, {transform_indices = @transform_3, window_bounds = array<i64: 4, 32, 32>}]} {
    %c0 = arith.constant 0 : index
    %c0_0 = arith.constant 0 : index
    %0 = vector.load %arg2[%c0, %c0_0] : memref<32x32xf32, #tpu.memory_space<vmem>>, vector<32x32xf32>
    %c0_1 = arith.constant 0 : index
    %c0_2 = arith.constant 0 : index
    %c0_3 = arith.constant 0 : index
    %1 = vector.load %arg1[%c0_1, %c0_2, %c0_3] : memref<4x32x32xf32, #tpu.memory_space<vmem>>, vector<1x32x32xf32>
    %2 = vector.shape_cast %1 : vector<1x32x32xf32> to vector<32x32xf32>
    %cst = arith.constant dense<0.000000e+00> : vector<32x32xf32>
    %3 = tpu.matmul %2, %0, %cst {dimension_numbers = #tpu.dot_dimension_numbers<[0], [0], [1], [1], [0, 1, 1, 1], [], []>} : vector<32x32xf32>, vector<32x32xf32>, vector<32x32xf32> -> vector<32x32xf32>
    %cst_4 = arith.constant 0.176776692 : f32
    %4 = vector.broadcast %cst_4 : f32 to vector<32x32xf32>
    %5 = arith.mulf %3, %4 : vector<32x32xf32>
    %cst_5 = arith.constant dense<0xFF800000> : vector<32xf32>
    %6 = vector.multi_reduction <maximumf>, %5, %cst_5 [1] : vector<32x32xf32> to vector<32xf32>
    %7 = vector.shape_cast %6 : vector<32xf32> to vector<32x1xf32>
    %8 = vector.broadcast %7 : vector<32x1xf32> to vector<32x32xf32>
    %9 = arith.subf %5, %8 : vector<32x32xf32>
    %10 = math.exp %9 : vector<32x32xf32>
    %cst_6 = arith.constant dense<0.000000e+00> : vector<32xf32>
    %11 = vector.multi_reduction <add>, %10, %cst_6 [1] : vector<32x32xf32> to vector<32xf32>
    %12 = vector.shape_cast %11 : vector<32xf32> to vector<32x1xf32>
    %13 = tpu.reciprocal %12 : vector<32x1xf32> -> vector<32x1xf32>
    %14 = vector.broadcast %13 : vector<32x1xf32> to vector<32x32xf32>
    %15 = arith.mulf %10, %14 : vector<32x32xf32>
    %cst_7 = arith.constant dense<0.000000e+00> : vector<32x32xf32>
    %16 = tpu.matmul %15, %2, %cst_7 {dimension_numbers = #tpu.dot_dimension_numbers<[0], [0], [1], [1], [0, 1, 1, 1], [], []>} : vector<32x32xf32>, vector<32x32xf32>, vector<32x32xf32> -> vector<32x32xf32>
    %c0_8 = arith.constant 0 : index
    %c0_9 = arith.constant 0 : index
    %c0_10 = arith.constant 0 : index
    %17 = vector.load %arg3[%c0_8, %c0_9, %c0_10] : memref<4x32x32xf32, #tpu.memory_space<vmem>>, vector<1x32x32xf32>
    %18 = vector.shape_cast %17 : vector<1x32x32xf32> to vector<32x32xf32>
    %19 = vector.shape_cast %16 : vector<32x32xf32> to vector<1x32x32xf32>
    tpu.vector_store %arg3[%c0_8, %c0_9, %c0_10], %19 {strides = array<i32>} : memref<4x32x32xf32, #tpu.memory_space<vmem>>, vector<1x32x32xf32>,
    %c0_11 = arith.constant 0 : index
    %c0_12 = arith.constant 0 : index
    %c0_13 = arith.constant 0 : index
    %20 = vector.load %arg4[%c0_11, %c0_12, %c0_13] : memref<4x32x32xf32, #tpu.memory_space<vmem>>, vector<1x32x32xf32>
    %21 = vector.shape_cast %20 : vector<1x32x32xf32> to vector<32x32xf32>
    %22 = vector.shape_cast %15 : vector<32x32xf32> to vector<1x32x32xf32>
    tpu.vector_store %arg4[%c0_11, %c0_12, %c0_13], %22 {strides = array<i32>} : memref<4x32x32xf32, #tpu.memory_space<vmem>>, vector<1x32x32xf32>,
    %c1 = arith.constant 1 : index
    %c0_14 = arith.constant 0 : index
    %c0_15 = arith.constant 0 : index
    %23 = vector.load %arg1[%c1, %c0_14, %c0_15] : memref<4x32x32xf32, #tpu.memory_space<vmem>>, vector<1x32x32xf32>
    %24 = vector.shape_cast %23 : vector<1x32x32xf32> to vector<32x32xf32>
    %cst_16 = arith.constant dense<0.000000e+00> : vector<32x32xf32>
    %25 = tpu.matmul %24, %0, %cst_16 {dimension_numbers = #tpu.dot_dimension_numbers<[0], [0], [1], [1], [0, 1, 1, 1], [], []>} : vector<32x32xf32>, vector<32x32xf32>, vector<32x32xf32> -> vector<32x32xf32>
    %cst_17 = arith.constant 0.176776692 : f32
    %26 = vector.broadcast %cst_17 : f32 to vector<32x32xf32>
    %27 = arith.mulf %25, %26 : vector<32x32xf32>
    %cst_18 = arith.constant dense<0xFF800000> : vector<32xf32>
    %28 = vector.multi_reduction <maximumf>, %27, %cst_18 [1] : vector<32x32xf32> to vector<32xf32>
    %29 = vector.shape_cast %28 : vector<32xf32> to vector<32x1xf32>
    %30 = vector.broadcast %29 : vector<32x1xf32> to vector<32x32xf32>
    %31 = arith.subf %27, %30 : vector<32x32xf32>
    %32 = math.exp %31 : vector<32x32xf32>
    %cst_19 = arith.constant dense<0.000000e+00> : vector<32xf32>
    %33 = vector.multi_reduction <add>, %32, %cst_19 [1] : vector<32x32xf32> to vector<32xf32>
    %34 = vector.shape_cast %33 : vector<32xf32> to vector<32x1xf32>
    %35 = tpu.reciprocal %34 : vector<32x1xf32> -> vector<32x1xf32>
    %36 = vector.broadcast %35 : vector<32x1xf32> to vector<32x32xf32>
    %37 = arith.mulf %32, %36 : vector<32x32xf32>
    %cst_20 = arith.constant dense<0.000000e+00> : vector<32x32xf32>
    %38 = tpu.matmul %37, %24, %cst_20 {dimension_numbers = #tpu.dot_dimension_numbers<[0], [0], [1], [1], [0, 1, 1, 1], [], []>} : vector<32x32xf32>, vector<32x32xf32>, vector<32x32xf32> -> vector<32x32xf32>
    %c1_21 = arith.constant 1 : index
    %c0_22 = arith.constant 0 : index
    %c0_23 = arith.constant 0 : index
    %39 = vector.load %arg3[%c1_21, %c0_22, %c0_23] : memref<4x32x32xf32, #tpu.memory_space<vmem>>, vector<1x32x32xf32>
    %40 = vector.shape_cast %39 : vector<1x32x32xf32> to vector<32x32xf32>
    %41 = vector.shape_cast %38 : vector<32x32xf32> to vector<1x32x32xf32>
    tpu.vector_store %arg3[%c1_21, %c0_22, %c0_23], %41 {strides = array<i32>} : memref<4x32x32xf32, #tpu.memory_space<vmem>>, vector<1x32x32xf32>,
    %c1_24 = arith.constant 1 : index
    %c0_25 = arith.constant 0 : index
    %c0_26 = arith.constant 0 : index
    %42 = vector.load %arg4[%c1_24, %c0_25, %c0_26] : memref<4x32x32xf32, #tpu.memory_space<vmem>>, vector<1x32x32xf32>
    %43 = vector.shape_cast %42 : vector<1x32x32xf32> to vector<32x32xf32>
    %44 = vector.shape_cast %37 : vector<32x32xf32> to vector<1x32x32xf32>
    tpu.vector_store %arg4[%c1_24, %c0_25, %c0_26], %44 {strides = array<i32>} : memref<4x32x32xf32, #tpu.memory_space<vmem>>, vector<1x32x32xf32>,
    %c2 = arith.constant 2 : index
    %c0_27 = arith.constant 0 : index
    %c0_28 = arith.constant 0 : index
    %45 = vector.load %arg1[%c2, %c0_27, %c0_28] : memref<4x32x32xf32, #tpu.memory_space<vmem>>, vector<1x32x32xf32>
    %46 = vector.shape_cast %45 : vector<1x32x32xf32> to vector<32x32xf32>
    %cst_29 = arith.constant dense<0.000000e+00> : vector<32x32xf32>
    %47 = tpu.matmul %46, %0, %cst_29 {dimension_numbers = #tpu.dot_dimension_numbers<[0], [0], [1], [1], [0, 1, 1, 1], [], []>} : vector<32x32xf32>, vector<32x32xf32>, vector<32x32xf32> -> vector<32x32xf32>
    %cst_30 = arith.constant 0.176776692 : f32
    %48 = vector.broadcast %cst_30 : f32 to vector<32x32xf32>
    %49 = arith.mulf %47, %48 : vector<32x32xf32>
    %cst_31 = arith.constant dense<0xFF800000> : vector<32xf32>
    %50 = vector.multi_reduction <maximumf>, %49, %cst_31 [1] : vector<32x32xf32> to vector<32xf32>
    %51 = vector.shape_cast %50 : vector<32xf32> to vector<32x1xf32>
    %52 = vector.broadcast %51 : vector<32x1xf32> to vector<32x32xf32>
    %53 = arith.subf %49, %52 : vector<32x32xf32>
    %54 = math.exp %53 : vector<32x32xf32>
    %cst_32 = arith.constant dense<0.000000e+00> : vector<32xf32>
    %55 = vector.multi_reduction <add>, %54, %cst_32 [1] : vector<32x32xf32> to vector<32xf32>
    %56 = vector.shape_cast %55 : vector<32xf32> to vector<32x1xf32>
    %57 = tpu.reciprocal %56 : vector<32x1xf32> -> vector<32x1xf32>
    %58 = vector.broadcast %57 : vector<32x1xf32> to vector<32x32xf32>
    %59 = arith.mulf %54, %58 : vector<32x32xf32>
    %cst_33 = arith.constant dense<0.000000e+00> : vector<32x32xf32>
    %60 = tpu.matmul %59, %46, %cst_33 {dimension_numbers = #tpu.dot_dimension_numbers<[0], [0], [1], [1], [0, 1, 1, 1], [], []>} : vector<32x32xf32>, vector<32x32xf32>, vector<32x32xf32> -> vector<32x32xf32>
    %c2_34 = arith.constant 2 : index
    %c0_35 = arith.constant 0 : index
    %c0_36 = arith.constant 0 : index
    %61 = vector.load %arg3[%c2_34, %c0_35, %c0_36] : memref<4x32x32xf32, #tpu.memory_space<vmem>>, vector<1x32x32xf32>
    %62 = vector.shape_cast %61 : vector<1x32x32xf32> to vector<32x32xf32>
    %63 = vector.shape_cast %60 : vector<32x32xf32> to vector<1x32x32xf32>
    tpu.vector_store %arg3[%c2_34, %c0_35, %c0_36], %63 {strides = array<i32>} : memref<4x32x32xf32, #tpu.memory_space<vmem>>, vector<1x32x32xf32>,
    %c2_37 = arith.constant 2 : index
    %c0_38 = arith.constant 0 : index
    %c0_39 = arith.constant 0 : index
    %64 = vector.load %arg4[%c2_37, %c0_38, %c0_39] : memref<4x32x32xf32, #tpu.memory_space<vmem>>, vector<1x32x32xf32>
    %65 = vector.shape_cast %64 : vector<1x32x32xf32> to vector<32x32xf32>
    %66 = vector.shape_cast %59 : vector<32x32xf32> to vector<1x32x32xf32>
    tpu.vector_store %arg4[%c2_37, %c0_38, %c0_39], %66 {strides = array<i32>} : memref<4x32x32xf32, #tpu.memory_space<vmem>>, vector<1x32x32xf32>,
    %c3 = arith.constant 3 : index
    %c0_40 = arith.constant 0 : index
    %c0_41 = arith.constant 0 : index
    %67 = vector.load %arg1[%c3, %c0_40, %c0_41] : memref<4x32x32xf32, #tpu.memory_space<vmem>>, vector<1x32x32xf32>
    %68 = vector.shape_cast %67 : vector<1x32x32xf32> to vector<32x32xf32>
    %cst_42 = arith.constant dense<0.000000e+00> : vector<32x32xf32>
    %69 = tpu.matmul %68, %0, %cst_42 {dimension_numbers = #tpu.dot_dimension_numbers<[0], [0], [1], [1], [0, 1, 1, 1], [], []>} : vector<32x32xf32>, vector<32x32xf32>, vector<32x32xf32> -> vector<32x32xf32>
    %cst_43 = arith.constant 0.176776692 : f32
    %70 = vector.broadcast %cst_43 : f32 to vector<32x32xf32>
    %71 = arith.mulf %69, %70 : vector<32x32xf32>
    %cst_44 = arith.constant dense<0xFF800000> : vector<32xf32>
    %72 = vector.multi_reduction <maximumf>, %71, %cst_44 [1] : vector<32x32xf32> to vector<32xf32>
    %73 = vector.shape_cast %72 : vector<32xf32> to vector<32x1xf32>
    %74 = vector.broadcast %73 : vector<32x1xf32> to vector<32x32xf32>
    %75 = arith.subf %71, %74 : vector<32x32xf32>
    %76 = math.exp %75 : vector<32x32xf32>
    %cst_45 = arith.constant dense<0.000000e+00> : vector<32xf32>
    %77 = vector.multi_reduction <add>, %76, %cst_45 [1] : vector<32x32xf32> to vector<32xf32>
    %78 = vector.shape_cast %77 : vector<32xf32> to vector<32x1xf32>
    %79 = tpu.reciprocal %78 : vector<32x1xf32> -> vector<32x1xf32>
    %80 = vector.broadcast %79 : vector<32x1xf32> to vector<32x32xf32>
    %81 = arith.mulf %76, %80 : vector<32x32xf32>
    %cst_46 = arith.constant dense<0.000000e+00> : vector<32x32xf32>
    %82 = tpu.matmul %81, %68, %cst_46 {dimension_numbers = #tpu.dot_dimension_numbers<[0], [0], [1], [1], [0, 1, 1, 1], [], []>} : vector<32x32xf32>, vector<32x32xf32>, vector<32x32xf32> -> vector<32x32xf32>
    %c3_47 = arith.constant 3 : index
    %c0_48 = arith.constant 0 : index
    %c0_49 = arith.constant 0 : index
    %83 = vector.load %arg3[%c3_47, %c0_48, %c0_49] : memref<4x32x32xf32, #tpu.memory_space<vmem>>, vector<1x32x32xf32>
    %84 = vector.shape_cast %83 : vector<1x32x32xf32> to vector<32x32xf32>
    %85 = vector.shape_cast %82 : vector<32x32xf32> to vector<1x32x32xf32>
    tpu.vector_store %arg3[%c3_47, %c0_48, %c0_49], %85 {strides = array<i32>} : memref<4x32x32xf32, #tpu.memory_space<vmem>>, vector<1x32x32xf32>,
    %c3_50 = arith.constant 3 : index
    %c0_51 = arith.constant 0 : index
    %c0_52 = arith.constant 0 : index
    %86 = vector.load %arg4[%c3_50, %c0_51, %c0_52] : memref<4x32x32xf32, #tpu.memory_space<vmem>>, vector<1x32x32xf32>
    %87 = vector.shape_cast %86 : vector<1x32x32xf32> to vector<32x32xf32>
    %88 = vector.shape_cast %81 : vector<32x32xf32> to vector<1x32x32xf32>
    tpu.vector_store %arg4[%c3_50, %c0_51, %c0_52], %88 {strides = array<i32>} : memref<4x32x32xf32, #tpu.memory_space<vmem>>, vector<1x32x32xf32>,
    return
  }
  func.func @transform_0(%arg0: i32) -> (i32, i32, i32) {
    %c0_i32 = arith.constant 0 : i32
    %c0_i32_0 = arith.constant 0 : i32
    %c0_i32_1 = arith.constant 0 : i32
    return %arg0, %c0_i32, %c0_i32_0 : i32, i32, i32
  }
  func.func @transform_1(%arg0: i32) -> (i32, i32) {
    %c0_i32 = arith.constant 0 : i32
    %c0_i32_0 = arith.constant 0 : i32
    %c0_i32_1 = arith.constant 0 : i32
    return %c0_i32, %c0_i32_0 : i32, i32
  }
  func.func @transform_2(%arg0: i32) -> (i32, i32, i32) {
    %c0_i32 = arith.constant 0 : i32
    %c0_i32_0 = arith.constant 0 : i32
    %c0_i32_1 = arith.constant 0 : i32
    return %arg0, %c0_i32, %c0_i32_0 : i32, i32, i32
  }
  func.func @transform_3(%arg0: i32) -> (i32, i32, i32) {
    %c0_i32 = arith.constant 0 : i32
    %c0_i32_0 = arith.constant 0 : i32
    %c0_i32_1 = arith.constant 0 : i32
    return %arg0, %c0_i32, %c0_i32_0 : i32, i32, i32
  }
}

</mosaic_0001>

<llo_original>
// kernel: tpu_custom_call.1
$region0: #{tpu_custom_call.1}
  #allocation0 [shape = 'u32[]', space=smem, size = 0x4, offset = 0x4, fixed_abs, tag = 'smem constant byte address 0x4 - core index']
  #allocation1 [shape = 'u32[72,128]{1,0:T(1,128)}', space=vmem, size = 0x9000, scoped, tag = 'internal scratch']
  %s0 = inlined_call_operand.hbm [shape: f32[8,32,32], index: 0, kind: input, shape index: {}]
  %s1 = inlined_call_operand.hbm [shape: f32[32,32], index: 1, kind: input, shape index: {}]
  %s2 = inlined_call_operand.hbm [shape: f32[8,32,32], index: 2, kind: output, shape index: {0}]
  %s3 = inlined_call_operand.hbm [shape: f32[8,32,32], index: 3, kind: output, shape index: {1}]
  %4 = xla_tuple %s2, %s3
  %s5 = sld [smem:[#allocation0]]
  $region57: #{tpu_custom_call.1} parent=0
    _
  %s7 = ssub.s32 1, %s5
  %s8 = scalar_select 0, %s7, %s5
  $region1: #{tpu_custom_call.1} parent=0
    #allocation2 [shape = 'u8[131072]{0}', space=vmem, size = 0x20000, scoped, tag = 'input window, operand 0']
    #allocation3 [shape = 's32[2]{0}', space=sflag, size = 0x8, scoped, tag = 'scoped memory for tpu_custom_call.1']
    #allocation4 [shape = 's32[2]{0}', space=sflag, size = 0x8, scoped, tag = 'scoped memory for tpu_custom_call.1']
    #allocation5 [shape = 'u8[16384]{0}', space=vmem, size = 0x4000, scoped, tag = 'input window, operand 1, single buffered']
    #allocation6 [shape = 's32[1]{0}', space=sflag, size = 0x4, scoped, tag = 'scoped memory for tpu_custom_call.1']
    #allocation7 [shape = 'u8[131072]{0}', space=vmem, size = 0x20000, scoped, tag = 'output window, operand 0']
    #allocation8 [shape = 'u8[131072]{0}', space=vmem, size = 0x20000, scoped, tag = 'output window, operand 1']
    #allocation9 [shape = 's32[2]{0}', space=sflag, size = 0x8, scoped, tag = 'scoped memory for tpu_custom_call.1']
    %9 = vsyncpa [#allocation3], 0
    %s10 = scalar_lea.sflag [#allocation3], 1
    %11 = vsyncpa %s10, 0
    %12 = vsyncpa [#allocation6], 0
    %13 = vsyncpa [#allocation4], 0
    %s14 = scalar_lea.sflag [#allocation4], 1
    %15 = vsyncpa %s14, 0
    %16 = vsyncpa [#allocation9], 0
    %s17 = scalar_lea.sflag [#allocation9], 1
    %18 = vsyncpa %s17, 0
    loop: start=0, step=1, limit=4
    $region2: #{tpu_custom_call.1} parent=1 // loop_pre_header
      _
    $region3: #{tpu_custom_call.1} parent=1 // loop_header
      %s20 = sphi 0, %s24
      %p21 = scmp.ge.s32.totalorder %s20, 4
      %s30 = sphi 0, %s32
      %s33 = sphi 0, %s30
      %s34 = sphi 0, %s33
      %s50 = sphi 0, %s34
      %s54 = sphi 0, %s54
      %s56 = sphi 0, %s54
      %s57 = sphi 0, %s56
      %s71 = sphi 0, %s57
      %s77 = sphi 0, %s79
      %s80 = sphi 0, %s77
      %s81 = sphi 0, %s80
      %s97 = sphi 0, %s81
      %s103 = sphi 0, %s105
      %s106 = sphi 0, %s103
      %s107 = sphi 0, %s106
      %s123 = sphi 0, %s107
    $region4: #{tpu_custom_call.1} parent=1 // loop_header_branch
      %23 = sbr.rel (%p21) target = $region8
    $region5: #{tpu_custom_call.1} parent=1 // loop_body
      %s25 = ssub.s32 %s20, 1
      %s26 = ssub.s32 %s20, 2
      %s27 = sadd.s32 %s20, 1
      %s28 = ssub.s32 %s20, %s27
      %p29 = scmp.eq.s32.totalorder %s28, 0
      %s31 = sadd.s32 %s30, 1
      %s32 = scalar_select %p29, %s30, %s31
      %p35 = pneg %p29
      %p36 = scmp.eq.s32.totalorder %s20, 1
      %p37 = por %p35, %p36
      %p38 = scmp.ne.s32.totalorder %s30, %s33
      %p39 = scmp.eq.s32.totalorder %s20, 0
      %p40 = por %p38, %p39
      %p41 = scmp.ne.s32.totalorder %s30, %s33
      %p42 = scmp.eq.s32.totalorder %s25, 1
      %p43 = por %p41, %p42
      %p44 = scmp.ne.s32.totalorder %s33, %s34
      %p45 = scmp.eq.s32.totalorder %s25, 0
      %p46 = por %p44, %p45
      %p47 = scmp.ne.s32.totalorder %s33, %s34
      %p48 = scmp.eq.s32.totalorder %s26, 1
      %p49 = por %p47, %p48
      %p51 = scmp.ne.s32.totalorder %s34, %s50
      %p52 = scmp.eq.s32.totalorder %s26, 0
      %p53 = por %p51, %p52
      %s55 = sadd.s32 %s54, 1
      %p58 = scmp.eq.s32.totalorder %s20, 1
      %p59 = scmp.ne.s32.totalorder %s54, %s56
      %p60 = scmp.eq.s32.totalorder %s20, 0
      %p61 = por %p59, %p60
      %p62 = scmp.ne.s32.totalorder %s54, %s56
      %p63 = scmp.eq.s32.totalorder %s25, 1
      %p64 = por %p62, %p63
      %p65 = scmp.ne.s32.totalorder %s56, %s57
      %p66 = scmp.eq.s32.totalorder %s25, 0
      %p67 = por %p65, %p66
      %p68 = scmp.ne.s32.totalorder %s56, %s57
      %p69 = scmp.eq.s32.totalorder %s26, 1
      %p70 = por %p68, %p69
      %p72 = scmp.ne.s32.totalorder %s57, %s71
      %p73 = scmp.eq.s32.totalorder %s26, 0
      %p74 = por %p72, %p73
      %s75 = ssub.s32 %s20, %s27
      %p76 = scmp.eq.s32.totalorder %s75, 0
      %s78 = sadd.s32 %s77, 1
      %s79 = scalar_select %p76, %s77, %s78
      %p82 = pneg %p76
      %p83 = scmp.eq.s32.totalorder %s20, 1
      %p84 = por %p82, %p83
      %p85 = scmp.ne.s32.totalorder %s77, %s80
      %p86 = scmp.eq.s32.totalorder %s20, 0
      %p87 = por %p85, %p86
      %p88 = scmp.ne.s32.totalorder %s77, %s80
      %p89 = scmp.eq.s32.totalorder %s25, 1
      %p90 = por %p88, %p89
      %p91 = scmp.ne.s32.totalorder %s80, %s81
      %p92 = scmp.eq.s32.totalorder %s25, 0
      %p93 = por %p91, %p92
      %p94 = scmp.ne.s32.totalorder %s80, %s81
      %p95 = scmp.eq.s32.totalorder %s26, 1
      %p96 = por %p94, %p95
      %p98 = scmp.ne.s32.totalorder %s81, %s97
      %p99 = scmp.eq.s32.totalorder %s26, 0
      %p100 = por %p98, %p99
      %s101 = ssub.s32 %s20, %s27
      %p102 = scmp.eq.s32.totalorder %s101, 0
      %s104 = sadd.s32 %s103, 1
      %s105 = scalar_select %p102, %s103, %s104
      %p108 = pneg %p102
      %p109 = scmp.eq.s32.totalorder %s20, 1
      %p110 = por %p108, %p109
      %p111 = scmp.ne.s32.totalorder %s103, %s106
      %p112 = scmp.eq.s32.totalorder %s20, 0
      %p113 = por %p111, %p112
      %p114 = scmp.ne.s32.totalorder %s103, %s106
      %p115 = scmp.eq.s32.totalorder %s25, 1
      %p116 = por %p114, %p115
      %p117 = scmp.ne.s32.totalorder %s106, %s107
      %p118 = scmp.eq.s32.totalorder %s25, 0
      %p119 = por %p117, %p118
      %p120 = scmp.ne.s32.totalorder %s106, %s107
      %p121 = scmp.eq.s32.totalorder %s26, 1
      %p122 = por %p120, %p121
      %p124 = scmp.ne.s32.totalorder %s107, %s123
      %p125 = scmp.eq.s32.totalorder %s26, 0
      %p126 = por %p124, %p125
      %p127 = scmp.le.s32.totalorder 1, %s20
      %p128 = scmp.lt.s32.totalorder %s20, 3
      %p129 = pnand %p127, %p128
      %p130 = pneg %p129
      // Predicated region
      $region9: #{tpu_custom_call.1} parent=5 // pred_check
        _
      $region10: #{tpu_custom_call.1} parent=5 // pred_check_branch
        %132 = sbr.rel (%p129) target = $region12
      $region11: #{tpu_custom_call.1} parent=5 // pred_region
        %s133 = ssub.s32 %s20, 1
        // Predicated region
        $region13: #{tpu_custom_call.1} parent=11 // pred_check
          %p134 = pneg %p67
        $region14: #{tpu_custom_call.1} parent=11 // pred_check_branch
          %136 = sbr.rel (%p134) target = $region16
        $region15: #{tpu_custom_call.1} parent=11 // pred_region
          %138 = vsyncadd [#allocation6], 0
          %s139 = sshll.u32 %s1, 4
          %s140 = int_to_ptr.hbm [resolvable:$true] %s139
          %s141 = sshll.u32 [#allocation5], 4
          %s142 = int_to_ptr.vmem [resolvable:$true] %s141
          %147 = dma.hbm_to_vmem [thread:$0]  %s140, 512, %s142, [#allocation6], 128, 128, 8
        $region16: #{tpu_custom_call.1} parent=11 // pred_fallthru
          _
      $region12: #{tpu_custom_call.1} parent=5 // pred_fallthru
        _
      %p148 = scmp.lt.s32.totalorder %s20, 2
      // Predicated region
      $region17: #{tpu_custom_call.1} parent=5 // pred_check
        %p149 = pneg %p148
      $region18: #{tpu_custom_call.1} parent=5 // pred_check_branch
        %151 = sbr.rel (%p149) target = $region20
      $region19: #{tpu_custom_call.1} parent=5 // pred_region
        // Predicated region
        $region21: #{tpu_custom_call.1} parent=19 // pred_check
          %p152 = pneg %p40
        $region22: #{tpu_custom_call.1} parent=19 // pred_check_branch
          %154 = sbr.rel (%p152) target = $region24
        $region23: #{tpu_custom_call.1} parent=19 // pred_region
          %s155 = sand.u32 %s30, 1
          %s156 = scalar_lea.sflag [#allocation3], %s155
          %s157 = sand.u32 %s30, 1
          %s158 = smul.addr %s157, 128
          %s159 = scalar_lea.vmem [#allocation2], %s158
          %s160 = smul.u32 4, %s20
          %162 = vsyncadd %s156, 0
          %s163 = smul.addr %s160, 4
          %s164 = smul.addr %s163, 8
          %s165 = scalar_lea.hbm %s0, %s164
          %s166 = sshll.u32 %s165, 4
          %s167 = int_to_ptr.hbm [resolvable:$true] %s166
          %s168 = sshll.u32 %s159, 4
          %s169 = int_to_ptr.vmem [resolvable:$true] %s168
          %174 = dma.hbm_to_vmem [thread:$0]  %s167, 2048, %s169, %s156, 128, 128, 8
        $region24: #{tpu_custom_call.1} parent=19 // pred_fallthru
          _
      $region20: #{tpu_custom_call.1} parent=5 // pred_fallthru
        _
      %p175 = scmp.le.s32.totalorder 1, %s20
      %p176 = scmp.lt.s32.totalorder %s20, 3
      %p177 = pnand %p175, %p176
      %p178 = pneg %p177
      // Predicated region
      $region25: #{tpu_custom_call.1} parent=5 // pred_check
        _
      $region26: #{tpu_custom_call.1} parent=5 // pred_check_branch
        %180 = sbr.rel (%p177) target = $region28
      $region27: #{tpu_custom_call.1} parent=5 // pred_region
        %s181 = ssub.s32 %s20, 1
        %s182 = sand.u32 %s33, 1
        %s183 = scalar_lea.sflag [#allocation3], %s182
        %s184 = sand.u32 %s33, 1
        %s185 = smul.addr %s184, 128
        %s186 = scalar_lea.vmem [#allocation2], %s185
        // Predicated region
        $region29: #{tpu_custom_call.1} parent=27 // pred_check
          %p187 = pneg %p46
        $region30: #{tpu_custom_call.1} parent=27 // pred_check_branch
          %189 = sbr.rel (%p187) target = $region32
        $region31: #{tpu_custom_call.1} parent=27 // pred_region
          %191 = dma.done %s183, 2048
        $region32: #{tpu_custom_call.1} parent=27 // pred_fallthru
          _
        // Predicated region
        $region33: #{tpu_custom_call.1} parent=27 // pred_check
          %p192 = pneg %p67
        $region34: #{tpu_custom_call.1} parent=27 // pred_check_branch
          %194 = sbr.rel (%p192) target = $region36
        $region35: #{tpu_custom_call.1} parent=27 // pred_region
          %196 = dma.done [#allocation6], 512
        $region36: #{tpu_custom_call.1} parent=27 // pred_fallthru
          _
        %s197 = sand.u32 %s33, 1
        %s198 = scalar_lea.sflag [#allocation3], %s197
        %s199 = sand.u32 %s33, 1
        %s200 = smul.addr %s199, 128
        %s201 = scalar_lea.vmem [#allocation2], %s200
        %p202 = pneg %p46
        %p203 = pneg %p43
        %p204 = pneg %p67
        %p205 = pneg %p64
        %p206 = pneg %p93
        %p207 = pneg %p90
        %s208 = sand.u32 %s80, 1
        %s209 = scalar_lea.sflag [#allocation4], %s208
        %s210 = sand.u32 %s80, 1
        %s211 = smul.addr %s210, 128
        %s212 = scalar_lea.vmem [#allocation7], %s211
        %p213 = pneg %p119
        %p214 = pneg %p116
        %s215 = sand.u32 %s106, 1
        %s216 = scalar_lea.sflag [#allocation9], %s215
        %s217 = sand.u32 %s106, 1
        %s218 = smul.addr %s217, 128
        %s219 = scalar_lea.vmem [#allocation8], %s218
        %s220 = smul.u32 4, %s25
        %s221 = smul.u32 4, %s25
        %s222 = smul.u32 4, %s25
        %v223 = vld [vmem:[#allocation5] sm:$0xff]
        %v224 = vld [vmem:[#allocation5 + $0x8] sm:$0xff]
        %v225 = vld [vmem:[#allocation5 + $0x10] sm:$0xff]
        %v226 = vld [vmem:[#allocation5 + $0x18] sm:$0xff]
        %v227 = vld [vmem:[%s186] sm:$0xff]
        %v228 = vld [vmem:[%s186 + $0x8] sm:$0xff]
        %v229 = vld [vmem:[%s186 + $0x10] sm:$0xff]
        %v230 = vld [vmem:[%s186 + $0x18] sm:$0xff]
        %231 = vxpose.xlu0.b32.start [1/16] %v227, 128
        %232 = vxpose.xlu0.b32.cont [2/16] %v228, 128
        %233 = vxpose.xlu0.b32.cont [3/16] %v229, 128
        %234 = vxpose.xlu0.b32.cont [4/16] %v230, 128
        %235 = vxpose.xlu0.b32.cont [5/16] 0.0, 128
        %236 = vxpose.xlu0.b32.cont [6/16] 0.0, 128
        %237 = vxpose.xlu0.b32.cont [7/16] 0.0, 128
        %238 = vxpose.xlu0.b32.cont [8/16] 0.0, 128
        %239 = vxpose.xlu0.b32.cont [9/16] 0.0, 128
        %240 = vxpose.xlu0.b32.cont [10/16] 0.0, 128
        %241 = vxpose.xlu0.b32.cont [11/16] 0.0, 128
        %242 = vxpose.xlu0.b32.cont [12/16] 0.0, 128
        %243 = vxpose.xlu0.b32.cont [13/16] 0.0, 128
        %244 = vxpose.xlu0.b32.cont [14/16] 0.0, 128
        %245 = vxpose.xlu0.b32.cont [15/16] 0.0, 128
        %246 = vxpose.xlu0.b32.end [16/16] 0.0, 128
        %v247 = vpop.trf.xlu0
        %v248 = vpop.trf.xlu0
        %v249 = vpop.trf.xlu0
        %v250 = vpop.trf.xlu0
        %v251 = vpop.trf.xlu0
        %v252 = vpop.trf.xlu0
        %v253 = vpop.trf.xlu0
        %v254 = vpop.trf.xlu0
        %v255 = vpop.trf.xlu0
        %v256 = vpop.trf.xlu0
        %v257 = vpop.trf.xlu0
        %v258 = vpop.trf.xlu0
        %v259 = vpop.trf.xlu0
        %v260 = vpop.trf.xlu0
        %v261 = vpop.trf.xlu0
        %v262 = vpop.trf.xlu0
        %vm263 = vcmask 261120
        %v265 = vsel %vm263, %v247, 0
        %v268 = vsel %vm263, %v248, 0
        %v271 = vsel %vm263, %v249, 0
        %v274 = vsel %vm263, %v250, 0
        %276 = vmatpush.msra.mxu0 0.0
        %277 = vmatpush.msra.mxu0 0.0
        %278 = vmatpush.msra.mxu0 0.0
        %279 = vmatpush.msra.mxu0 0.0
        %280 = vmatpush.msra.mxu0 0.0
        %281 = vmatpush.msra.mxu0 0.0
        %282 = vmatpush.msra.mxu0 0.0
        %283 = vmatpush.msra.mxu0 0.0
        %284 = vmatpush.msra.mxu0 0.0
        %285 = vmatpush.msra.mxu0 0.0
        %286 = vmatpush.msra.mxu0 0.0
        %287 = vmatpush.msra.mxu0 0.0
        %288 = vmatpush.msra.mxu0 %v226
        %289 = vmatpush.msra.mxu0 %v225
        %290 = vmatpush.msra.mxu0 %v224
        %291 = vmatpush.msra.mxu0 %v223
        %292 = vmatmul.f32.gmra.mxu0 %v265
        %v293 = vpop.f32.mrf.mxu0
        %v294 = vadd.f32 0.0, %v293
        %295 = vmatmul.f32.gmra.mxu0 %v268
        %v296 = vpop.f32.mrf.mxu0
        %v297 = vadd.f32 0.0, %v296
        %298 = vmatmul.f32.gmra.mxu0 %v271
        %v299 = vpop.f32.mrf.mxu0
        %v300 = vadd.f32 0.0, %v299
        %301 = vmatmul.f32.gmra.mxu0 %v274
        %v302 = vpop.f32.mrf.mxu0
        %v303 = vadd.f32 0.0, %v302
        %304 = vdwg.mxu0
        %v305 = vmul.f32 %v294, 0.17677669
        %v306 = vmul.f32 %v297, 0.17677669
        %v307 = vmul.f32 %v300, 0.17677669
        %v308 = vmul.f32 %v303, 0.17677669
        %v309 = vsel %vm263, %v305, -inf
        %310 = vmax.xlane.f32.xlu0 %v309
        %v311 = vpop.xlane.xlu0 %310
        %v312 = vsel %vm263, %v306, -inf
        %313 = vmax.xlane.f32.xlu0 %v312
        %v314 = vpop.xlane.xlu0 %313
        %v315 = vsel %vm263, %v307, -inf
        %316 = vmax.xlane.f32.xlu0 %v315
        %v317 = vpop.xlane.xlu0 %316
        %v318 = vsel %vm263, %v308, -inf
        %319 = vmax.xlane.f32.xlu0 %v318
        %v320 = vpop.xlane.xlu0 %319
        %v321 = vsub.f32 %v305, %v311
        %v322 = vsub.f32 %v306, %v314
        %v323 = vsub.f32 %v307, %v317
        %v324 = vsub.f32 %v308, %v320
        %v325 = vmul.f32 %v321, 1.442695
        %v326 = vpow.pop %v325
        %v327 = vmul.f32 %v322, 1.442695
        %v328 = vpow.pop %v327
        %v329 = vmul.f32 %v323, 1.442695
        %v330 = vpow.pop %v329
        %v331 = vmul.f32 %v324, 1.442695
        %v332 = vpow.pop %v331
        %v333 = vsel %vm263, %v326, 0.0
        %334 = vadd.xlane.f32.xlu0 %v333
        %v335 = vpop.xlane.xlu0 %334
        %v336 = vsel %vm263, %v328, 0.0
        %337 = vadd.xlane.f32.xlu0 %v336
        %v338 = vpop.xlane.xlu0 %337
        %v339 = vsel %vm263, %v330, 0.0
        %340 = vadd.xlane.f32.xlu0 %v339
        %v341 = vpop.xlane.xlu0 %340
        %v342 = vsel %vm263, %v332, 0.0
        %343 = vadd.xlane.f32.xlu0 %v342
        %v344 = vpop.xlane.xlu0 %343
        %v345 = vrcp.pop %v335
        %v346 = vmul.f32 %v335, %v345
        %v347 = vsub.f32 1.0, %v346
        %v348 = vmul.f32 %v345, %v347
        %v349 = vadd.f32 %v345, %v348
        %vm350 = vweird.f32 %v335
        %vm351 = vweird.f32 %v345
        %vm352 = vmor %vm350, %vm351
        %v353 = vsel %vm352, %v345, %v349
        %v354 = vand.u32 2147483647, %v335
        %vm355 = vcmp.eq.f32.partialorder %v354, 8.507059e+37
        %v356 = vand.u32 %v335, 2147483648
        %v357 = vor.u32 1.1754944e-38, %v356
        %v358 = vsel %vm355, %v357, %v353
        %v359 = vrcp.pop %v338
        %v360 = vmul.f32 %v338, %v359
        %v361 = vsub.f32 1.0, %v360
        %v362 = vmul.f32 %v359, %v361
        %v363 = vadd.f32 %v359, %v362
        %vm364 = vweird.f32 %v338
        %vm365 = vweird.f32 %v359
        %vm366 = vmor %vm364, %vm365
        %v367 = vsel %vm366, %v359, %v363
        %v368 = vand.u32 2147483647, %v338
        %vm369 = vcmp.eq.f32.partialorder %v368, 8.507059e+37
        %v370 = vand.u32 %v338, 2147483648
        %v371 = vor.u32 1.1754944e-38, %v370
        %v372 = vsel %vm369, %v371, %v367
        %v373 = vrcp.pop %v341
        %v374 = vmul.f32 %v341, %v373
        %v375 = vsub.f32 1.0, %v374
        %v376 = vmul.f32 %v373, %v375
        %v377 = vadd.f32 %v373, %v376
        %vm378 = vweird.f32 %v341
        %vm379 = vweird.f32 %v373
        %vm380 = vmor %vm378, %vm379
        %v381 = vsel %vm380, %v373, %v377
        %v382 = vand.u32 2147483647, %v341
        %vm383 = vcmp.eq.f32.partialorder %v382, 8.507059e+37
        %v384 = vand.u32 %v341, 2147483648
        %v385 = vor.u32 1.1754944e-38, %v384
        %v386 = vsel %vm383, %v385, %v381
        %v387 = vrcp.pop %v344
        %v388 = vmul.f32 %v344, %v387
        %v389 = vsub.f32 1.0, %v388
        %v390 = vmul.f32 %v387, %v389
        %v391 = vadd.f32 %v387, %v390
        %vm392 = vweird.f32 %v344
        %vm393 = vweird.f32 %v387
        %vm394 = vmor %vm392, %vm393
        %v395 = vsel %vm394, %v387, %v391
        %v396 = vand.u32 2147483647, %v344
        %vm397 = vcmp.eq.f32.partialorder %v396, 8.507059e+37
        %v398 = vand.u32 %v344, 2147483648
        %v399 = vor.u32 1.1754944e-38, %v398
        %v400 = vsel %vm397, %v399, %v395
        %v401 = vmul.f32 %v326, %v358
        %v402 = vmul.f32 %v328, %v372
        %v403 = vmul.f32 %v330, %v386
        %v404 = vmul.f32 %v332, %v400
        %405 = vxpose.xlu0.b32.start [1/16] %v401, 128
        %406 = vxpose.xlu0.b32.cont [2/16] %v402, 128
        %407 = vxpose.xlu0.b32.cont [3/16] %v403, 128
        %408 = vxpose.xlu0.b32.cont [4/16] %v404, 128
        %409 = vxpose.xlu0.b32.cont [5/16] 0.0, 128
        %410 = vxpose.xlu0.b32.cont [6/16] 0.0, 128
        %411 = vxpose.xlu0.b32.cont [7/16] 0.0, 128
        %412 = vxpose.xlu0.b32.cont [8/16] 0.0, 128
        %413 = vxpose.xlu0.b32.cont [9/16] 0.0, 128
        %414 = vxpose.xlu0.b32.cont [10/16] 0.0, 128
        %415 = vxpose.xlu0.b32.cont [11/16] 0.0, 128
        %416 = vxpose.xlu0.b32.cont [12/16] 0.0, 128
        %417 = vxpose.xlu0.b32.cont [13/16] 0.0, 128
        %418 = vxpose.xlu0.b32.cont [14/16] 0.0, 128
        %419 = vxpose.xlu0.b32.cont [15/16] 0.0, 128
        %420 = vxpose.xlu0.b32.end [16/16] 0.0, 128
        %v421 = vpop.trf.xlu0
        %v422 = vpop.trf.xlu0
        %v423 = vpop.trf.xlu0
        %v424 = vpop.trf.xlu0
        %v425 = vpop.trf.xlu0
        %v426 = vpop.trf.xlu0
        %v427 = vpop.trf.xlu0
        %v428 = vpop.trf.xlu0
        %v429 = vpop.trf.xlu0
        %v430 = vpop.trf.xlu0
        %v431 = vpop.trf.xlu0
        %v432 = vpop.trf.xlu0
        %v433 = vpop.trf.xlu0
        %v434 = vpop.trf.xlu0
        %v435 = vpop.trf.xlu0
        %v436 = vpop.trf.xlu0
        %v438 = vsel %vm263, %v421, 0
        %v441 = vsel %vm263, %v422, 0
        %v444 = vsel %vm263, %v423, 0
        %v447 = vsel %vm263, %v424, 0
        %449 = vmatpush.msra.mxu0 0.0
        %450 = vmatpush.msra.mxu0 0.0
        %451 = vmatpush.msra.mxu0 0.0
        %452 = vmatpush.msra.mxu0 0.0
        %453 = vmatpush.msra.mxu0 0.0
        %454 = vmatpush.msra.mxu0 0.0
        %455 = vmatpush.msra.mxu0 0.0
        %456 = vmatpush.msra.mxu0 0.0
        %457 = vmatpush.msra.mxu0 0.0
        %458 = vmatpush.msra.mxu0 0.0
        %459 = vmatpush.msra.mxu0 0.0
        %460 = vmatpush.msra.mxu0 0.0
        %461 = vmatpush.msra.mxu0 %v230
        %462 = vmatpush.msra.mxu0 %v229
        %463 = vmatpush.msra.mxu0 %v228
        %464 = vmatpush.msra.mxu0 %v227
        %465 = vmatmul.f32.gmra.mxu0 %v438
        %v466 = vpop.f32.mrf.mxu0
        %v467 = vadd.f32 0.0, %v466
        %468 = vmatmul.f32.gmra.mxu0 %v441
        %v469 = vpop.f32.mrf.mxu0
        %v470 = vadd.f32 0.0, %v469
        %471 = vmatmul.f32.gmra.mxu0 %v444
        %v472 = vpop.f32.mrf.mxu0
        %v473 = vadd.f32 0.0, %v472
        %474 = vmatmul.f32.gmra.mxu0 %v447
        %v475 = vpop.f32.mrf.mxu0
        %v476 = vadd.f32 0.0, %v475
        %477 = vdwg.mxu0
        %478 = vst.msk [vmem:[%s212] sm:$0xff] %vm263, %v467
        %479 = vst.msk [vmem:[%s212 + $0x8] sm:$0xff] %vm263, %v470
        %480 = vst.msk [vmem:[%s212 + $0x10] sm:$0xff] %vm263, %v473
        %481 = vst.msk [vmem:[%s212 + $0x18] sm:$0xff] %vm263, %v476
        %482 = vst.msk [vmem:[%s219] sm:$0xff] %vm263, %v401
        %483 = vst.msk [vmem:[%s219 + $0x8] sm:$0xff] %vm263, %v402
        %484 = vst.msk [vmem:[%s219 + $0x10] sm:$0xff] %vm263, %v403
        %485 = vst.msk [vmem:[%s219 + $0x18] sm:$0xff] %vm263, %v404
        %s486 = scalar_lea.vmem %s186, 32 [#allocation2]
        %v487 = vld [vmem:[%s486] sm:$0xff]
        %v488 = vld [vmem:[%s486 + $0x8] sm:$0xff]
        %v489 = vld [vmem:[%s486 + $0x10] sm:$0xff]
        %v490 = vld [vmem:[%s486 + $0x18] sm:$0xff]
        %491 = vxpose.xlu0.b32.start [1/16] %v487, 128
        %492 = vxpose.xlu0.b32.cont [2/16] %v488, 128
        %493 = vxpose.xlu0.b32.cont [3/16] %v489, 128
        %494 = vxpose.xlu0.b32.cont [4/16] %v490, 128
        %495 = vxpose.xlu0.b32.cont [5/16] 0.0, 128
        %496 = vxpose.xlu0.b32.cont [6/16] 0.0, 128
        %497 = vxpose.xlu0.b32.cont [7/16] 0.0, 128
        %498 = vxpose.xlu0.b32.cont [8/16] 0.0, 128
        %499 = vxpose.xlu0.b32.cont [9/16] 0.0, 128
        %500 = vxpose.xlu0.b32.cont [10/16] 0.0, 128
        %501 = vxpose.xlu0.b32.cont [11/16] 0.0, 128
        %502 = vxpose.xlu0.b32.cont [12/16] 0.0, 128
        %503 = vxpose.xlu0.b32.cont [13/16] 0.0, 128
        %504 = vxpose.xlu0.b32.cont [14/16] 0.0, 128
        %505 = vxpose.xlu0.b32.cont [15/16] 0.0, 128
        %506 = vxpose.xlu0.b32.end [16/16] 0.0, 128
        %v507 = vpop.trf.xlu0
        %v508 = vpop.trf.xlu0
        %v509 = vpop.trf.xlu0
        %v510 = vpop.trf.xlu0
        %v511 = vpop.trf.xlu0
        %v512 = vpop.trf.xlu0
        %v513 = vpop.trf.xlu0
        %v514 = vpop.trf.xlu0
        %v515 = vpop.trf.xlu0
        %v516 = vpop.trf.xlu0
        %v517 = vpop.trf.xlu0
        %v518 = vpop.trf.xlu0
        %v519 = vpop.trf.xlu0
        %v520 = vpop.trf.xlu0
        %v521 = vpop.trf.xlu0
        %v522 = vpop.trf.xlu0
        %v524 = vsel %vm263, %v507, 0
        %v527 = vsel %vm263, %v508, 0
        %v530 = vsel %vm263, %v509, 0
        %v533 = vsel %vm263, %v510, 0
        %535 = vmatpush.msra.mxu0 0.0
        %536 = vmatpush.msra.mxu0 0.0
        %537 = vmatpush.msra.mxu0 0.0
        %538 = vmatpush.msra.mxu0 0.0
        %539 = vmatpush.msra.mxu0 0.0
        %540 = vmatpush.msra.mxu0 0.0
        %541 = vmatpush.msra.mxu0 0.0
        %542 = vmatpush.msra.mxu0 0.0
        %543 = vmatpush.msra.mxu0 0.0
        %544 = vmatpush.msra.mxu0 0.0
        %545 = vmatpush.msra.mxu0 0.0
        %546 = vmatpush.msra.mxu0 0.0
        %547 = vmatpush.msra.mxu0 %v226
        %548 = vmatpush.msra.mxu0 %v225
        %549 = vmatpush.msra.mxu0 %v224
        %550 = vmatpush.msra.mxu0 %v223
        %551 = vmatmul.f32.gmra.mxu0 %v524
        %v552 = vpop.f32.mrf.mxu0
        %v553 = vadd.f32 0.0, %v552
        %554 = vmatmul.f32.gmra.mxu0 %v527
        %v555 = vpop.f32.mrf.mxu0
        %v556 = vadd.f32 0.0, %v555
        %557 = vmatmul.f32.gmra.mxu0 %v530
        %v558 = vpop.f32.mrf.mxu0
        %v559 = vadd.f32 0.0, %v558
        %560 = vmatmul.f32.gmra.mxu0 %v533
        %v561 = vpop.f32.mrf.mxu0
        %v562 = vadd.f32 0.0, %v561
        %563 = vdwg.mxu0
        %v564 = vmul.f32 %v553, 0.17677669
        %v565 = vmul.f32 %v556, 0.17677669
        %v566 = vmul.f32 %v559, 0.17677669
        %v567 = vmul.f32 %v562, 0.17677669
        %v568 = vsel %vm263, %v564, -inf
        %569 = vmax.xlane.f32.xlu0 %v568
        %v570 = vpop.xlane.xlu0 %569
        %v571 = vsel %vm263, %v565, -inf
        %572 = vmax.xlane.f32.xlu0 %v571
        %v573 = vpop.xlane.xlu0 %572
        %v574 = vsel %vm263, %v566, -inf
        %575 = vmax.xlane.f32.xlu0 %v574
        %v576 = vpop.xlane.xlu0 %575
        %v577 = vsel %vm263, %v567, -inf
        %578 = vmax.xlane.f32.xlu0 %v577
        %v579 = vpop.xlane.xlu0 %578
        %v580 = vsub.f32 %v564, %v570
        %v581 = vsub.f32 %v565, %v573
        %v582 = vsub.f32 %v566, %v576
        %v583 = vsub.f32 %v567, %v579
        %v584 = vmul.f32 %v580, 1.442695
        %v585 = vpow.pop %v584
        %v586 = vmul.f32 %v581, 1.442695
        %v587 = vpow.pop %v586
        %v588 = vmul.f32 %v582, 1.442695
        %v589 = vpow.pop %v588
        %v590 = vmul.f32 %v583, 1.442695
        %v591 = vpow.pop %v590
        %v592 = vsel %vm263, %v585, 0.0
        %593 = vadd.xlane.f32.xlu0 %v592
        %v594 = vpop.xlane.xlu0 %593
        %v595 = vsel %vm263, %v587, 0.0
        %596 = vadd.xlane.f32.xlu0 %v595
        %v597 = vpop.xlane.xlu0 %596
        %v598 = vsel %vm263, %v589, 0.0
        %599 = vadd.xlane.f32.xlu0 %v598
        %v600 = vpop.xlane.xlu0 %599
        %v601 = vsel %vm263, %v591, 0.0
        %602 = vadd.xlane.f32.xlu0 %v601
        %v603 = vpop.xlane.xlu0 %602
        %v604 = vrcp.pop %v594
        %v605 = vmul.f32 %v594, %v604
        %v606 = vsub.f32 1.0, %v605
        %v607 = vmul.f32 %v604, %v606
        %v608 = vadd.f32 %v604, %v607
        %vm609 = vweird.f32 %v594
        %vm610 = vweird.f32 %v604
        %vm611 = vmor %vm609, %vm610
        %v612 = vsel %vm611, %v604, %v608
        %v613 = vand.u32 2147483647, %v594
        %vm614 = vcmp.eq.f32.partialorder %v613, 8.507059e+37
        %v615 = vand.u32 %v594, 2147483648
        %v616 = vor.u32 1.1754944e-38, %v615
        %v617 = vsel %vm614, %v616, %v612
        %v618 = vrcp.pop %v597
        %v619 = vmul.f32 %v597, %v618
        %v620 = vsub.f32 1.0, %v619
        %v621 = vmul.f32 %v618, %v620
        %v622 = vadd.f32 %v618, %v621
        %vm623 = vweird.f32 %v597
        %vm624 = vweird.f32 %v618
        %vm625 = vmor %vm623, %vm624
        %v626 = vsel %vm625, %v618, %v622
        %v627 = vand.u32 2147483647, %v597
        %vm628 = vcmp.eq.f32.partialorder %v627, 8.507059e+37
        %v629 = vand.u32 %v597, 2147483648
        %v630 = vor.u32 1.1754944e-38, %v629
        %v631 = vsel %vm628, %v630, %v626
        %v632 = vrcp.pop %v600
        %v633 = vmul.f32 %v600, %v632
        %v634 = vsub.f32 1.0, %v633
        %v635 = vmul.f32 %v632, %v634
        %v636 = vadd.f32 %v632, %v635
        %vm637 = vweird.f32 %v600
        %vm638 = vweird.f32 %v632
        %vm639 = vmor %vm637, %vm638
        %v640 = vsel %vm639, %v632, %v636
        %v641 = vand.u32 2147483647, %v600
        %vm642 = vcmp.eq.f32.partialorder %v641, 8.507059e+37
        %v643 = vand.u32 %v600, 2147483648
        %v644 = vor.u32 1.1754944e-38, %v643
        %v645 = vsel %vm642, %v644, %v640
        %v646 = vrcp.pop %v603
        %v647 = vmul.f32 %v603, %v646
        %v648 = vsub.f32 1.0, %v647
        %v649 = vmul.f32 %v646, %v648
        %v650 = vadd.f32 %v646, %v649
        %vm651 = vweird.f32 %v603
        %vm652 = vweird.f32 %v646
        %vm653 = vmor %vm651, %vm652
        %v654 = vsel %vm653, %v646, %v650
        %v655 = vand.u32 2147483647, %v603
        %vm656 = vcmp.eq.f32.partialorder %v655, 8.507059e+37
        %v657 = vand.u32 %v603, 2147483648
        %v658 = vor.u32 1.1754944e-38, %v657
        %v659 = vsel %vm656, %v658, %v654
        %v660 = vmul.f32 %v585, %v617
        %v661 = vmul.f32 %v587, %v631
        %v662 = vmul.f32 %v589, %v645
        %v663 = vmul.f32 %v591, %v659
        %664 = vxpose.xlu0.b32.start [1/16] %v660, 128
        %665 = vxpose.xlu0.b32.cont [2/16] %v661, 128
        %666 = vxpose.xlu0.b32.cont [3/16] %v662, 128
        %667 = vxpose.xlu0.b32.cont [4/16] %v663, 128
        %668 = vxpose.xlu0.b32.cont [5/16] 0.0, 128
        %669 = vxpose.xlu0.b32.cont [6/16] 0.0, 128
        %670 = vxpose.xlu0.b32.cont [7/16] 0.0, 128
        %671 = vxpose.xlu0.b32.cont [8/16] 0.0, 128
        %672 = vxpose.xlu0.b32.cont [9/16] 0.0, 128
        %673 = vxpose.xlu0.b32.cont [10/16] 0.0, 128
        %674 = vxpose.xlu0.b32.cont [11/16] 0.0, 128
        %675 = vxpose.xlu0.b32.cont [12/16] 0.0, 128
        %676 = vxpose.xlu0.b32.cont [13/16] 0.0, 128
        %677 = vxpose.xlu0.b32.cont [14/16] 0.0, 128
        %678 = vxpose.xlu0.b32.cont [15/16] 0.0, 128
        %679 = vxpose.xlu0.b32.end [16/16] 0.0, 128
        %v680 = vpop.trf.xlu0
        %v681 = vpop.trf.xlu0
        %v682 = vpop.trf.xlu0
        %v683 = vpop.trf.xlu0
        %v684 = vpop.trf.xlu0
        %v685 = vpop.trf.xlu0
        %v686 = vpop.trf.xlu0
        %v687 = vpop.trf.xlu0
        %v688 = vpop.trf.xlu0
        %v689 = vpop.trf.xlu0
        %v690 = vpop.trf.xlu0
        %v691 = vpop.trf.xlu0
        %v692 = vpop.trf.xlu0
        %v693 = vpop.trf.xlu0
        %v694 = vpop.trf.xlu0
        %v695 = vpop.trf.xlu0
        %v697 = vsel %vm263, %v680, 0
        %v700 = vsel %vm263, %v681, 0
        %v703 = vsel %vm263, %v682, 0
        %v706 = vsel %vm263, %v683, 0
        %708 = vmatpush.msra.mxu0 0.0
        %709 = vmatpush.msra.mxu0 0.0
        %710 = vmatpush.msra.mxu0 0.0
        %711 = vmatpush.msra.mxu0 0.0
        %712 = vmatpush.msra.mxu0 0.0
        %713 = vmatpush.msra.mxu0 0.0
        %714 = vmatpush.msra.mxu0 0.0
        %715 = vmatpush.msra.mxu0 0.0
        %716 = vmatpush.msra.mxu0 0.0
        %717 = vmatpush.msra.mxu0 0.0
        %718 = vmatpush.msra.mxu0 0.0
        %719 = vmatpush.msra.mxu0 0.0
        %720 = vmatpush.msra.mxu0 %v490
        %721 = vmatpush.msra.mxu0 %v489
        %722 = vmatpush.msra.mxu0 %v488
        %723 = vmatpush.msra.mxu0 %v487
        %724 = vmatmul.f32.gmra.mxu0 %v697
        %v725 = vpop.f32.mrf.mxu0
        %v726 = vadd.f32 0.0, %v725
        %727 = vmatmul.f32.gmra.mxu0 %v700
        %v728 = vpop.f32.mrf.mxu0
        %v729 = vadd.f32 0.0, %v728
        %730 = vmatmul.f32.gmra.mxu0 %v703
        %v731 = vpop.f32.mrf.mxu0
        %v732 = vadd.f32 0.0, %v731
        %733 = vmatmul.f32.gmra.mxu0 %v706
        %v734 = vpop.f32.mrf.mxu0
        %v735 = vadd.f32 0.0, %v734
        %736 = vdwg.mxu0
        %s737 = scalar_lea.vmem %s212, 32 [#allocation7]
        %738 = vst.msk [vmem:[%s737] sm:$0xff] %vm263, %v726
        %739 = vst.msk [vmem:[%s737 + $0x8] sm:$0xff] %vm263, %v729
        %740 = vst.msk [vmem:[%s737 + $0x10] sm:$0xff] %vm263, %v732
        %741 = vst.msk [vmem:[%s737 + $0x18] sm:$0xff] %vm263, %v735
        %s742 = scalar_lea.vmem %s219, 32 [#allocation8]
        %743 = vst.msk [vmem:[%s742] sm:$0xff] %vm263, %v660
        %744 = vst.msk [vmem:[%s742 + $0x8] sm:$0xff] %vm263, %v661
        %745 = vst.msk [vmem:[%s742 + $0x10] sm:$0xff] %vm263, %v662
        %746 = vst.msk [vmem:[%s742 + $0x18] sm:$0xff] %vm263, %v663
        %s747 = scalar_lea.vmem %s186, 64 [#allocation2]
        %v748 = vld [vmem:[%s747] sm:$0xff]
        %v749 = vld [vmem:[%s747 + $0x8] sm:$0xff]
        %v750 = vld [vmem:[%s747 + $0x10] sm:$0xff]
        %v751 = vld [vmem:[%s747 + $0x18] sm:$0xff]
        %752 = vxpose.xlu0.b32.start [1/16] %v748, 128
        %753 = vxpose.xlu0.b32.cont [2/16] %v749, 128
        %754 = vxpose.xlu0.b32.cont [3/16] %v750, 128
        %755 = vxpose.xlu0.b32.cont [4/16] %v751, 128
        %756 = vxpose.xlu0.b32.cont [5/16] 0.0, 128
        %757 = vxpose.xlu0.b32.cont [6/16] 0.0, 128
        %758 = vxpose.xlu0.b32.cont [7/16] 0.0, 128
        %759 = vxpose.xlu0.b32.cont [8/16] 0.0, 128
        %760 = vxpose.xlu0.b32.cont [9/16] 0.0, 128
        %761 = vxpose.xlu0.b32.cont [10/16] 0.0, 128
        %762 = vxpose.xlu0.b32.cont [11/16] 0.0, 128
        %763 = vxpose.xlu0.b32.cont [12/16] 0.0, 128
        %764 = vxpose.xlu0.b32.cont [13/16] 0.0, 128
        %765 = vxpose.xlu0.b32.cont [14/16] 0.0, 128
        %766 = vxpose.xlu0.b32.cont [15/16] 0.0, 128
        %767 = vxpose.xlu0.b32.end [16/16] 0.0, 128
        %v768 = vpop.trf.xlu0
        %v769 = vpop.trf.xlu0
        %v770 = vpop.trf.xlu0
        %v771 = vpop.trf.xlu0
        %v772 = vpop.trf.xlu0
        %v773 = vpop.trf.xlu0
        %v774 = vpop.trf.xlu0
        %v775 = vpop.trf.xlu0
        %v776 = vpop.trf.xlu0
        %v777 = vpop.trf.xlu0
        %v778 = vpop.trf.xlu0
        %v779 = vpop.trf.xlu0
        %v780 = vpop.trf.xlu0
        %v781 = vpop.trf.xlu0
        %v782 = vpop.trf.xlu0
        %v783 = vpop.trf.xlu0
        %v785 = vsel %vm263, %v768, 0
        %v788 = vsel %vm263, %v769, 0
        %v791 = vsel %vm263, %v770, 0
        %v794 = vsel %vm263, %v771, 0
        %796 = vmatpush.msra.mxu0 0.0
        %797 = vmatpush.msra.mxu0 0.0
        %798 = vmatpush.msra.mxu0 0.0
        %799 = vmatpush.msra.mxu0 0.0
        %800 = vmatpush.msra.mxu0 0.0
        %801 = vmatpush.msra.mxu0 0.0
        %802 = vmatpush.msra.mxu0 0.0
        %803 = vmatpush.msra.mxu0 0.0
        %804 = vmatpush.msra.mxu0 0.0
        %805 = vmatpush.msra.mxu0 0.0
        %806 = vmatpush.msra.mxu0 0.0
        %807 = vmatpush.msra.mxu0 0.0
        %808 = vmatpush.msra.mxu0 %v226
        %809 = vmatpush.msra.mxu0 %v225
        %810 = vmatpush.msra.mxu0 %v224
        %811 = vmatpush.msra.mxu0 %v223
        %812 = vmatmul.f32.gmra.mxu0 %v785
        %v813 = vpop.f32.mrf.mxu0
        %v814 = vadd.f32 0.0, %v813
        %815 = vmatmul.f32.gmra.mxu0 %v788
        %v816 = vpop.f32.mrf.mxu0
        %v817 = vadd.f32 0.0, %v816
        %818 = vmatmul.f32.gmra.mxu0 %v791
        %v819 = vpop.f32.mrf.mxu0
        %v820 = vadd.f32 0.0, %v819
        %821 = vmatmul.f32.gmra.mxu0 %v794
        %v822 = vpop.f32.mrf.mxu0
        %v823 = vadd.f32 0.0, %v822
        %824 = vdwg.mxu0
        %v825 = vmul.f32 %v814, 0.17677669
        %v826 = vmul.f32 %v817, 0.17677669
        %v827 = vmul.f32 %v820, 0.17677669
        %v828 = vmul.f32 %v823, 0.17677669
        %v829 = vsel %vm263, %v825, -inf
        %830 = vmax.xlane.f32.xlu0 %v829
        %v831 = vpop.xlane.xlu0 %830
        %v832 = vsel %vm263, %v826, -inf
        %833 = vmax.xlane.f32.xlu0 %v832
        %v834 = vpop.xlane.xlu0 %833
        %v835 = vsel %vm263, %v827, -inf
        %836 = vmax.xlane.f32.xlu0 %v835
        %v837 = vpop.xlane.xlu0 %836
        %v838 = vsel %vm263, %v828, -inf
        %839 = vmax.xlane.f32.xlu0 %v838
        %v840 = vpop.xlane.xlu0 %839
        %v841 = vsub.f32 %v825, %v831
        %v842 = vsub.f32 %v826, %v834
        %v843 = vsub.f32 %v827, %v837
        %v844 = vsub.f32 %v828, %v840
        %v845 = vmul.f32 %v841, 1.442695
        %v846 = vpow.pop %v845
        %v847 = vmul.f32 %v842, 1.442695
        %v848 = vpow.pop %v847
        %v849 = vmul.f32 %v843, 1.442695
        %v850 = vpow.pop %v849
        %v851 = vmul.f32 %v844, 1.442695
        %v852 = vpow.pop %v851
        %v853 = vsel %vm263, %v846, 0.0
        %854 = vadd.xlane.f32.xlu0 %v853
        %v855 = vpop.xlane.xlu0 %854
        %v856 = vsel %vm263, %v848, 0.0
        %857 = vadd.xlane.f32.xlu0 %v856
        %v858 = vpop.xlane.xlu0 %857
        %v859 = vsel %vm263, %v850, 0.0
        %860 = vadd.xlane.f32.xlu0 %v859
        %v861 = vpop.xlane.xlu0 %860
        %v862 = vsel %vm263, %v852, 0.0
        %863 = vadd.xlane.f32.xlu0 %v862
        %v864 = vpop.xlane.xlu0 %863
        %v865 = vrcp.pop %v855
        %v866 = vmul.f32 %v855, %v865
        %v867 = vsub.f32 1.0, %v866
        %v868 = vmul.f32 %v865, %v867
        %v869 = vadd.f32 %v865, %v868
        %vm870 = vweird.f32 %v855
        %vm871 = vweird.f32 %v865
        %vm872 = vmor %vm870, %vm871
        %v873 = vsel %vm872, %v865, %v869
        %v874 = vand.u32 2147483647, %v855
        %vm875 = vcmp.eq.f32.partialorder %v874, 8.507059e+37
        %v876 = vand.u32 %v855, 2147483648
        %v877 = vor.u32 1.1754944e-38, %v876
        %v878 = vsel %vm875, %v877, %v873
        %v879 = vrcp.pop %v858
        %v880 = vmul.f32 %v858, %v879
        %v881 = vsub.f32 1.0, %v880
        %v882 = vmul.f32 %v879, %v881
        %v883 = vadd.f32 %v879, %v882
        %vm884 = vweird.f32 %v858
        %vm885 = vweird.f32 %v879
        %vm886 = vmor %vm884, %vm885
        %v887 = vsel %vm886, %v879, %v883
        %v888 = vand.u32 2147483647, %v858
        %vm889 = vcmp.eq.f32.partialorder %v888, 8.507059e+37
        %v890 = vand.u32 %v858, 2147483648
        %v891 = vor.u32 1.1754944e-38, %v890
        %v892 = vsel %vm889, %v891, %v887
        %v893 = vrcp.pop %v861
        %v894 = vmul.f32 %v861, %v893
        %v895 = vsub.f32 1.0, %v894
        %v896 = vmul.f32 %v893, %v895
        %v897 = vadd.f32 %v893, %v896
        %vm898 = vweird.f32 %v861
        %vm899 = vweird.f32 %v893
        %vm900 = vmor %vm898, %vm899
        %v901 = vsel %vm900, %v893, %v897
        %v902 = vand.u32 2147483647, %v861
        %vm903 = vcmp.eq.f32.partialorder %v902, 8.507059e+37
        %v904 = vand.u32 %v861, 2147483648
        %v905 = vor.u32 1.1754944e-38, %v904
        %v906 = vsel %vm903, %v905, %v901
        %v907 = vrcp.pop %v864
        %v908 = vmul.f32 %v864, %v907
        %v909 = vsub.f32 1.0, %v908
        %v910 = vmul.f32 %v907, %v909
        %v911 = vadd.f32 %v907, %v910
        %vm912 = vweird.f32 %v864
        %vm913 = vweird.f32 %v907
        %vm914 = vmor %vm912, %vm913
        %v915 = vsel %vm914, %v907, %v911
        %v916 = vand.u32 2147483647, %v864
        %vm917 = vcmp.eq.f32.partialorder %v916, 8.507059e+37
        %v918 = vand.u32 %v864, 2147483648
        %v919 = vor.u32 1.1754944e-38, %v918
        %v920 = vsel %vm917, %v919, %v915
        %v921 = vmul.f32 %v846, %v878
        %v922 = vmul.f32 %v848, %v892
        %v923 = vmul.f32 %v850, %v906
        %v924 = vmul.f32 %v852, %v920
        %925 = vxpose.xlu0.b32.start [1/16] %v921, 128
        %926 = vxpose.xlu0.b32.cont [2/16] %v922, 128
        %927 = vxpose.xlu0.b32.cont [3/16] %v923, 128
        %928 = vxpose.xlu0.b32.cont [4/16] %v924, 128
        %929 = vxpose.xlu0.b32.cont [5/16] 0.0, 128
        %930 = vxpose.xlu0.b32.cont [6/16] 0.0, 128
        %931 = vxpose.xlu0.b32.cont [7/16] 0.0, 128
        %932 = vxpose.xlu0.b32.cont [8/16] 0.0, 128
        %933 = vxpose.xlu0.b32.cont [9/16] 0.0, 128
        %934 = vxpose.xlu0.b32.cont [10/16] 0.0, 128
        %935 = vxpose.xlu0.b32.cont [11/16] 0.0, 128
        %936 = vxpose.xlu0.b32.cont [12/16] 0.0, 128
        %937 = vxpose.xlu0.b32.cont [13/16] 0.0, 128
        %938 = vxpose.xlu0.b32.cont [14/16] 0.0, 128
        %939 = vxpose.xlu0.b32.cont [15/16] 0.0, 128
        %940 = vxpose.xlu0.b32.end [16/16] 0.0, 128
        %v941 = vpop.trf.xlu0
        %v942 = vpop.trf.xlu0
        %v943 = vpop.trf.xlu0
        %v944 = vpop.trf.xlu0
        %v945 = vpop.trf.xlu0
        %v946 = vpop.trf.xlu0
        %v947 = vpop.trf.xlu0
        %v948 = vpop.trf.xlu0
        %v949 = vpop.trf.xlu0
        %v950 = vpop.trf.xlu0
        %v951 = vpop.trf.xlu0
        %v952 = vpop.trf.xlu0
        %v953 = vpop.trf.xlu0
        %v954 = vpop.trf.xlu0
        %v955 = vpop.trf.xlu0
        %v956 = vpop.trf.xlu0
        %v958 = vsel %vm263, %v941, 0
        %v961 = vsel %vm263, %v942, 0
        %v964 = vsel %vm263, %v943, 0
        %v967 = vsel %vm263, %v944, 0
        %969 = vmatpush.msra.mxu0 0.0
        %970 = vmatpush.msra.mxu0 0.0
        %971 = vmatpush.msra.mxu0 0.0
        %972 = vmatpush.msra.mxu0 0.0
        %973 = vmatpush.msra.mxu0 0.0
        %974 = vmatpush.msra.mxu0 0.0
        %975 = vmatpush.msra.mxu0 0.0
        %976 = vmatpush.msra.mxu0 0.0
        %977 = vmatpush.msra.mxu0 0.0
        %978 = vmatpush.msra.mxu0 0.0
        %979 = vmatpush.msra.mxu0 0.0
        %980 = vmatpush.msra.mxu0 0.0
        %981 = vmatpush.msra.mxu0 %v751
        %982 = vmatpush.msra.mxu0 %v750
        %983 = vmatpush.msra.mxu0 %v749
        %984 = vmatpush.msra.mxu0 %v748
        %985 = vmatmul.f32.gmra.mxu0 %v958
        %v986 = vpop.f32.mrf.mxu0
        %v987 = vadd.f32 0.0, %v986
        %988 = vmatmul.f32.gmra.mxu0 %v961
        %v989 = vpop.f32.mrf.mxu0
        %v990 = vadd.f32 0.0, %v989
        %991 = vmatmul.f32.gmra.mxu0 %v964
        %v992 = vpop.f32.mrf.mxu0
        %v993 = vadd.f32 0.0, %v992
        %994 = vmatmul.f32.gmra.mxu0 %v967
        %v995 = vpop.f32.mrf.mxu0
        %v996 = vadd.f32 0.0, %v995
        %997 = vdwg.mxu0
        %s998 = scalar_lea.vmem %s212, 64 [#allocation7]
        %999 = vst.msk [vmem:[%s998] sm:$0xff] %vm263, %v987
        %1000 = vst.msk [vmem:[%s998 + $0x8] sm:$0xff] %vm263, %v990
        %1001 = vst.msk [vmem:[%s998 + $0x10] sm:$0xff] %vm263, %v993
        %1002 = vst.msk [vmem:[%s998 + $0x18] sm:$0xff] %vm263, %v996
        %s1003 = scalar_lea.vmem %s219, 64 [#allocation8]
        %1004 = vst.msk [vmem:[%s1003] sm:$0xff] %vm263, %v921
        %1005 = vst.msk [vmem:[%s1003 + $0x8] sm:$0xff] %vm263, %v922
        %1006 = vst.msk [vmem:[%s1003 + $0x10] sm:$0xff] %vm263, %v923
        %1007 = vst.msk [vmem:[%s1003 + $0x18] sm:$0xff] %vm263, %v924
        %s1008 = scalar_lea.vmem %s186, 96 [#allocation2]
        %v1009 = vld [vmem:[%s1008] sm:$0xff]
        %v1010 = vld [vmem:[%s1008 + $0x8] sm:$0xff]
        %v1011 = vld [vmem:[%s1008 + $0x10] sm:$0xff]
        %v1012 = vld [vmem:[%s1008 + $0x18] sm:$0xff]
        %1013 = vxpose.xlu0.b32.start [1/16] %v1009, 128
        %1014 = vxpose.xlu0.b32.cont [2/16] %v1010, 128
        %1015 = vxpose.xlu0.b32.cont [3/16] %v1011, 128
        %1016 = vxpose.xlu0.b32.cont [4/16] %v1012, 128
        %1017 = vxpose.xlu0.b32.cont [5/16] 0.0, 128
        %1018 = vxpose.xlu0.b32.cont [6/16] 0.0, 128
        %1019 = vxpose.xlu0.b32.cont [7/16] 0.0, 128
        %1020 = vxpose.xlu0.b32.cont [8/16] 0.0, 128
        %1021 = vxpose.xlu0.b32.cont [9/16] 0.0, 128
        %1022 = vxpose.xlu0.b32.cont [10/16] 0.0, 128
        %1023 = vxpose.xlu0.b32.cont [11/16] 0.0, 128
        %1024 = vxpose.xlu0.b32.cont [12/16] 0.0, 128
        %1025 = vxpose.xlu0.b32.cont [13/16] 0.0, 128
        %1026 = vxpose.xlu0.b32.cont [14/16] 0.0, 128
        %1027 = vxpose.xlu0.b32.cont [15/16] 0.0, 128
        %1028 = vxpose.xlu0.b32.end [16/16] 0.0, 128
        %v1029 = vpop.trf.xlu0
        %v1030 = vpop.trf.xlu0
        %v1031 = vpop.trf.xlu0
        %v1032 = vpop.trf.xlu0
        %v1033 = vpop.trf.xlu0
        %v1034 = vpop.trf.xlu0
        %v1035 = vpop.trf.xlu0
        %v1036 = vpop.trf.xlu0
        %v1037 = vpop.trf.xlu0
        %v1038 = vpop.trf.xlu0
        %v1039 = vpop.trf.xlu0
        %v1040 = vpop.trf.xlu0
        %v1041 = vpop.trf.xlu0
        %v1042 = vpop.trf.xlu0
        %v1043 = vpop.trf.xlu0
        %v1044 = vpop.trf.xlu0
        %v1046 = vsel %vm263, %v1029, 0
        %v1049 = vsel %vm263, %v1030, 0
        %v1052 = vsel %vm263, %v1031, 0
        %v1055 = vsel %vm263, %v1032, 0
        %1057 = vmatpush.msra.mxu0 0.0
        %1058 = vmatpush.msra.mxu0 0.0
        %1059 = vmatpush.msra.mxu0 0.0
        %1060 = vmatpush.msra.mxu0 0.0
        %1061 = vmatpush.msra.mxu0 0.0
        %1062 = vmatpush.msra.mxu0 0.0
        %1063 = vmatpush.msra.mxu0 0.0
        %1064 = vmatpush.msra.mxu0 0.0
        %1065 = vmatpush.msra.mxu0 0.0
        %1066 = vmatpush.msra.mxu0 0.0
        %1067 = vmatpush.msra.mxu0 0.0
        %1068 = vmatpush.msra.mxu0 0.0
        %1069 = vmatpush.msra.mxu0 %v226
        %1070 = vmatpush.msra.mxu0 %v225
        %1071 = vmatpush.msra.mxu0 %v224
        %1072 = vmatpush.msra.mxu0 %v223
        %1073 = vmatmul.f32.gmra.mxu0 %v1046
        %v1074 = vpop.f32.mrf.mxu0
        %v1075 = vadd.f32 0.0, %v1074
        %1076 = vmatmul.f32.gmra.mxu0 %v1049
        %v1077 = vpop.f32.mrf.mxu0
        %v1078 = vadd.f32 0.0, %v1077
        %1079 = vmatmul.f32.gmra.mxu0 %v1052
        %v1080 = vpop.f32.mrf.mxu0
        %v1081 = vadd.f32 0.0, %v1080
        %1082 = vmatmul.f32.gmra.mxu0 %v1055
        %v1083 = vpop.f32.mrf.mxu0
        %v1084 = vadd.f32 0.0, %v1083
        %1085 = vdwg.mxu0
        %v1086 = vmul.f32 %v1075, 0.17677669
        %v1087 = vmul.f32 %v1078, 0.17677669
        %v1088 = vmul.f32 %v1081, 0.17677669
        %v1089 = vmul.f32 %v1084, 0.17677669
        %v1090 = vsel %vm263, %v1086, -inf
        %1091 = vmax.xlane.f32.xlu0 %v1090
        %v1092 = vpop.xlane.xlu0 %1091
        %v1093 = vsel %vm263, %v1087, -inf
        %1094 = vmax.xlane.f32.xlu0 %v1093
        %v1095 = vpop.xlane.xlu0 %1094
        %v1096 = vsel %vm263, %v1088, -inf
        %1097 = vmax.xlane.f32.xlu0 %v1096
        %v1098 = vpop.xlane.xlu0 %1097
        %v1099 = vsel %vm263, %v1089, -inf
        %1100 = vmax.xlane.f32.xlu0 %v1099
        %v1101 = vpop.xlane.xlu0 %1100
        %v1102 = vsub.f32 %v1086, %v1092
        %v1103 = vsub.f32 %v1087, %v1095
        %v1104 = vsub.f32 %v1088, %v1098
        %v1105 = vsub.f32 %v1089, %v1101
        %v1106 = vmul.f32 %v1102, 1.442695
        %v1107 = vpow.pop %v1106
        %v1108 = vmul.f32 %v1103, 1.442695
        %v1109 = vpow.pop %v1108
        %v1110 = vmul.f32 %v1104, 1.442695
        %v1111 = vpow.pop %v1110
        %v1112 = vmul.f32 %v1105, 1.442695
        %v1113 = vpow.pop %v1112
        %v1114 = vsel %vm263, %v1107, 0.0
        %1115 = vadd.xlane.f32.xlu0 %v1114
        %v1116 = vpop.xlane.xlu0 %1115
        %v1117 = vsel %vm263, %v1109, 0.0
        %1118 = vadd.xlane.f32.xlu0 %v1117
        %v1119 = vpop.xlane.xlu0 %1118
        %v1120 = vsel %vm263, %v1111, 0.0
        %1121 = vadd.xlane.f32.xlu0 %v1120
        %v1122 = vpop.xlane.xlu0 %1121
        %v1123 = vsel %vm263, %v1113, 0.0
        %1124 = vadd.xlane.f32.xlu0 %v1123
        %v1125 = vpop.xlane.xlu0 %1124
        %v1126 = vrcp.pop %v1116
        %v1127 = vmul.f32 %v1116, %v1126
        %v1128 = vsub.f32 1.0, %v1127
        %v1129 = vmul.f32 %v1126, %v1128
        %v1130 = vadd.f32 %v1126, %v1129
        %vm1131 = vweird.f32 %v1116
        %vm1132 = vweird.f32 %v1126
        %vm1133 = vmor %vm1131, %vm1132
        %v1134 = vsel %vm1133, %v1126, %v1130
        %v1135 = vand.u32 2147483647, %v1116
        %vm1136 = vcmp.eq.f32.partialorder %v1135, 8.507059e+37
        %v1137 = vand.u32 %v1116, 2147483648
        %v1138 = vor.u32 1.1754944e-38, %v1137
        %v1139 = vsel %vm1136, %v1138, %v1134
        %v1140 = vrcp.pop %v1119
        %v1141 = vmul.f32 %v1119, %v1140
        %v1142 = vsub.f32 1.0, %v1141
        %v1143 = vmul.f32 %v1140, %v1142
        %v1144 = vadd.f32 %v1140, %v1143
        %vm1145 = vweird.f32 %v1119
        %vm1146 = vweird.f32 %v1140
        %vm1147 = vmor %vm1145, %vm1146
        %v1148 = vsel %vm1147, %v1140, %v1144
        %v1149 = vand.u32 2147483647, %v1119
        %vm1150 = vcmp.eq.f32.partialorder %v1149, 8.507059e+37
        %v1151 = vand.u32 %v1119, 2147483648
        %v1152 = vor.u32 1.1754944e-38, %v1151
        %v1153 = vsel %vm1150, %v1152, %v1148
        %v1154 = vrcp.pop %v1122
        %v1155 = vmul.f32 %v1122, %v1154
        %v1156 = vsub.f32 1.0, %v1155
        %v1157 = vmul.f32 %v1154, %v1156
        %v1158 = vadd.f32 %v1154, %v1157
        %vm1159 = vweird.f32 %v1122
        %vm1160 = vweird.f32 %v1154
        %vm1161 = vmor %vm1159, %vm1160
        %v1162 = vsel %vm1161, %v1154, %v1158
        %v1163 = vand.u32 2147483647, %v1122
        %vm1164 = vcmp.eq.f32.partialorder %v1163, 8.507059e+37
        %v1165 = vand.u32 %v1122, 2147483648
        %v1166 = vor.u32 1.1754944e-38, %v1165
        %v1167 = vsel %vm1164, %v1166, %v1162
        %v1168 = vrcp.pop %v1125
        %v1169 = vmul.f32 %v1125, %v1168
        %v1170 = vsub.f32 1.0, %v1169
        %v1171 = vmul.f32 %v1168, %v1170
        %v1172 = vadd.f32 %v1168, %v1171
        %vm1173 = vweird.f32 %v1125
        %vm1174 = vweird.f32 %v1168
        %vm1175 = vmor %vm1173, %vm1174
        %v1176 = vsel %vm1175, %v1168, %v1172
        %v1177 = vand.u32 2147483647, %v1125
        %vm1178 = vcmp.eq.f32.partialorder %v1177, 8.507059e+37
        %v1179 = vand.u32 %v1125, 2147483648
        %v1180 = vor.u32 1.1754944e-38, %v1179
        %v1181 = vsel %vm1178, %v1180, %v1176
        %v1182 = vmul.f32 %v1107, %v1139
        %v1183 = vmul.f32 %v1109, %v1153
        %v1184 = vmul.f32 %v1111, %v1167
        %v1185 = vmul.f32 %v1113, %v1181
        %1186 = vxpose.xlu0.b32.start [1/16] %v1182, 128
        %1187 = vxpose.xlu0.b32.cont [2/16] %v1183, 128
        %1188 = vxpose.xlu0.b32.cont [3/16] %v1184, 128
        %1189 = vxpose.xlu0.b32.cont [4/16] %v1185, 128
        %1190 = vxpose.xlu0.b32.cont [5/16] 0.0, 128
        %1191 = vxpose.xlu0.b32.cont [6/16] 0.0, 128
        %1192 = vxpose.xlu0.b32.cont [7/16] 0.0, 128
        %1193 = vxpose.xlu0.b32.cont [8/16] 0.0, 128
        %1194 = vxpose.xlu0.b32.cont [9/16] 0.0, 128
        %1195 = vxpose.xlu0.b32.cont [10/16] 0.0, 128
        %1196 = vxpose.xlu0.b32.cont [11/16] 0.0, 128
        %1197 = vxpose.xlu0.b32.cont [12/16] 0.0, 128
        %1198 = vxpose.xlu0.b32.cont [13/16] 0.0, 128
        %1199 = vxpose.xlu0.b32.cont [14/16] 0.0, 128
        %1200 = vxpose.xlu0.b32.cont [15/16] 0.0, 128
        %1201 = vxpose.xlu0.b32.end [16/16] 0.0, 128
        %v1202 = vpop.trf.xlu0
        %v1203 = vpop.trf.xlu0
        %v1204 = vpop.trf.xlu0
        %v1205 = vpop.trf.xlu0
        %v1206 = vpop.trf.xlu0
        %v1207 = vpop.trf.xlu0
        %v1208 = vpop.trf.xlu0
        %v1209 = vpop.trf.xlu0
        %v1210 = vpop.trf.xlu0
        %v1211 = vpop.trf.xlu0
        %v1212 = vpop.trf.xlu0
        %v1213 = vpop.trf.xlu0
        %v1214 = vpop.trf.xlu0
        %v1215 = vpop.trf.xlu0
        %v1216 = vpop.trf.xlu0
        %v1217 = vpop.trf.xlu0
        %v1219 = vsel %vm263, %v1202, 0
        %v1222 = vsel %vm263, %v1203, 0
        %v1225 = vsel %vm263, %v1204, 0
        %v1228 = vsel %vm263, %v1205, 0
        %1230 = vmatpush.msra.mxu0 0.0
        %1231 = vmatpush.msra.mxu0 0.0
        %1232 = vmatpush.msra.mxu0 0.0
        %1233 = vmatpush.msra.mxu0 0.0
        %1234 = vmatpush.msra.mxu0 0.0
        %1235 = vmatpush.msra.mxu0 0.0
        %1236 = vmatpush.msra.mxu0 0.0
        %1237 = vmatpush.msra.mxu0 0.0
        %1238 = vmatpush.msra.mxu0 0.0
        %1239 = vmatpush.msra.mxu0 0.0
        %1240 = vmatpush.msra.mxu0 0.0
        %1241 = vmatpush.msra.mxu0 0.0
        %1242 = vmatpush.msra.mxu0 %v1012
        %1243 = vmatpush.msra.mxu0 %v1011
        %1244 = vmatpush.msra.mxu0 %v1010
        %1245 = vmatpush.msra.mxu0 %v1009
        %1246 = vmatmul.f32.gmra.mxu0 %v1219
        %v1247 = vpop.f32.mrf.mxu0
        %v1248 = vadd.f32 0.0, %v1247
        %1249 = vmatmul.f32.gmra.mxu0 %v1222
        %v1250 = vpop.f32.mrf.mxu0
        %v1251 = vadd.f32 0.0, %v1250
        %1252 = vmatmul.f32.gmra.mxu0 %v1225
        %v1253 = vpop.f32.mrf.mxu0
        %v1254 = vadd.f32 0.0, %v1253
        %1255 = vmatmul.f32.gmra.mxu0 %v1228
        %v1256 = vpop.f32.mrf.mxu0
        %v1257 = vadd.f32 0.0, %v1256
        %1258 = vdwg.mxu0
        %s1259 = scalar_lea.vmem %s212, 96 [#allocation7]
        %1260 = vst.msk [vmem:[%s1259] sm:$0xff] %vm263, %v1248
        %1261 = vst.msk [vmem:[%s1259 + $0x8] sm:$0xff] %vm263, %v1251
        %1262 = vst.msk [vmem:[%s1259 + $0x10] sm:$0xff] %vm263, %v1254
        %1263 = vst.msk [vmem:[%s1259 + $0x18] sm:$0xff] %vm263, %v1257
        %s1264 = scalar_lea.vmem %s219, 96 [#allocation8]
        %1265 = vst.msk [vmem:[%s1264] sm:$0xff] %vm263, %v1182
        %1266 = vst.msk [vmem:[%s1264 + $0x8] sm:$0xff] %vm263, %v1183
        %1267 = vst.msk [vmem:[%s1264 + $0x10] sm:$0xff] %vm263, %v1184
        %1268 = vst.msk [vmem:[%s1264 + $0x18] sm:$0xff] %vm263, %v1185
        %s1269 = sand.u32 %s80, 1
        %s1270 = scalar_lea.sflag [#allocation4], %s1269
        %s1271 = sand.u32 %s80, 1
        %s1272 = smul.addr %s1271, 128
        %s1273 = scalar_lea.vmem [#allocation7], %s1272
        %s1274 = sand.u32 %s106, 1
        %s1275 = scalar_lea.sflag [#allocation9], %s1274
        %s1276 = sand.u32 %s106, 1
        %s1277 = smul.addr %s1276, 128
        %s1278 = scalar_lea.vmem [#allocation8], %s1277
        // Predicated region
        $region37: #{tpu_custom_call.1} parent=27 // pred_check
          %p1279 = pneg %p90
        $region38: #{tpu_custom_call.1} parent=27 // pred_check_branch
          %1281 = sbr.rel (%p1279) target = $region40
        $region39: #{tpu_custom_call.1} parent=27 // pred_region
          %s1282 = smul.u32 4, %s25
          %1284 = vsyncadd %s1270, 0
          %s1285 = smul.addr %s1282, 4
          %s1286 = smul.addr %s1285, 8
          %s1287 = scalar_lea.hbm %s2, %s1286
          %s1288 = sshll.u32 %s1273, 4
          %s1289 = int_to_ptr.vmem [resolvable:$true] %s1288
          %s1290 = sshll.u32 %s1287, 4
          %s1291 = int_to_ptr.hbm [resolvable:$true] %s1290
          %1296 = dma.vmem_to_hbm [thread:$0]  %s1289, 2048, %s1291, %s1270, 128, 128, 8
        $region40: #{tpu_custom_call.1} parent=27 // pred_fallthru
          _
        // Predicated region
        $region41: #{tpu_custom_call.1} parent=27 // pred_check
          %p1297 = pneg %p116
        $region42: #{tpu_custom_call.1} parent=27 // pred_check_branch
          %1299 = sbr.rel (%p1297) target = $region44
        $region43: #{tpu_custom_call.1} parent=27 // pred_region
          %s1300 = smul.u32 4, %s25
          %1302 = vsyncadd %s1275, 0
          %s1303 = smul.addr %s1300, 4
          %s1304 = smul.addr %s1303, 8
          %s1305 = scalar_lea.hbm %s3, %s1304
          %s1306 = sshll.u32 %s1278, 4
          %s1307 = int_to_ptr.vmem [resolvable:$true] %s1306
          %s1308 = sshll.u32 %s1305, 4
          %s1309 = int_to_ptr.hbm [resolvable:$true] %s1308
          %1314 = dma.vmem_to_hbm [thread:$0]  %s1307, 2048, %s1309, %s1275, 128, 128, 8
        $region44: #{tpu_custom_call.1} parent=27 // pred_fallthru
          _
      $region28: #{tpu_custom_call.1} parent=5 // pred_fallthru
        _
      %p1315 = scmp.le.s32.totalorder 2, %s20
      // Predicated region
      $region45: #{tpu_custom_call.1} parent=5 // pred_check
        %p1316 = pneg %p1315
      $region46: #{tpu_custom_call.1} parent=5 // pred_check_branch
        %1318 = sbr.rel (%p1316) target = $region48
      $region47: #{tpu_custom_call.1} parent=5 // pred_region
        %s1319 = ssub.s32 %s20, 2
        // Predicated region
        $region49: #{tpu_custom_call.1} parent=47 // pred_check
          %p1320 = pneg %p96
        $region50: #{tpu_custom_call.1} parent=47 // pred_check_branch
          %1322 = sbr.rel (%p1320) target = $region52
        $region51: #{tpu_custom_call.1} parent=47 // pred_region
          %s1323 = sand.u32 %s81, 1
          %s1324 = scalar_lea.sflag [#allocation4], %s1323
          %s1325 = sand.u32 %s81, 1
          %s1326 = smul.addr %s1325, 128
          %s1327 = scalar_lea.vmem [#allocation7], %s1326
          %1329 = dma.done %s1324, 2048
        $region52: #{tpu_custom_call.1} parent=47 // pred_fallthru
          _
        // Predicated region
        $region53: #{tpu_custom_call.1} parent=47 // pred_check
          %p1330 = pneg %p122
        $region54: #{tpu_custom_call.1} parent=47 // pred_check_branch
          %1332 = sbr.rel (%p1330) target = $region56
        $region55: #{tpu_custom_call.1} parent=47 // pred_region
          %s1333 = sand.u32 %s107, 1
          %s1334 = scalar_lea.sflag [#allocation9], %s1333
          %s1335 = sand.u32 %s107, 1
          %s1336 = smul.addr %s1335, 128
          %s1337 = scalar_lea.vmem [#allocation8], %s1336
          %1339 = dma.done %s1334, 2048
        $region56: #{tpu_custom_call.1} parent=47 // pred_fallthru
          _
      $region48: #{tpu_custom_call.1} parent=5 // pred_fallthru
        _
    $region6: #{tpu_custom_call.1} parent=1 // loop_footer
      %s24 = sadd.s32 1, %s20
    $region7: #{tpu_custom_call.1} parent=1 // loop_footer_branch
      %19 = sbr.rel target = $region3
    $region8: #{tpu_custom_call.1} parent=1 // loop_exit
      _
    %1340 = vsyncpa [#allocation3], 1
    %s1341 = scalar_lea.sflag [#allocation3], 1
    %1342 = vsyncpa %s1341, 1
    %1343 = vsyncpa [#allocation6], 1
    %1344 = vsyncpa [#allocation4], 1
    %s1345 = scalar_lea.sflag [#allocation4], 1
    %1346 = vsyncpa %s1345, 1
    %1347 = vsyncpa [#allocation9], 1
    %s1348 = scalar_lea.sflag [#allocation9], 1
    %1349 = vsyncpa %s1348, 1

</llo_original>
